<compile_context>
chip_gen: v6e
topology: v6e:2x2x1
jax: 0.10.0
libtpu: 0.0.40
codegen_flags: <defaults>
</compile_context>

<pallas_src>
import functools

import jax
import jax.numpy as jnp
import numpy as np
from jax.experimental import pallas as pl
from jax.experimental.pallas import tpu as pltpu


def _round_up(x, m):
    return ((x + m - 1) // m) * m


_VMEM_LIMIT = 32 * 1024 * 1024  # column tiling keeps real usage small; safe on v5e/v6e/v7x


# ----------------------------------------------------------------------------
# Kernel 1: per-layer precompute
#   xw    = x @ W                                  [tm, H*C]
#   alpha = xw @ [a_src | a_dst]                   [tm, 2H]   (merged matmul)
# Outputs: xw_aug (per-head [xw_h | 1], denominator folded into kernel-2 matmul),
#          alpha_src [tm, H], alpha_dst [tm, H]
# ----------------------------------------------------------------------------
def gat_precompute_kernel(x_ref, w_ref, acat_ref, xw_ref, asrc_ref, adst_ref, *,
                          heads, ch):
    xw = jnp.dot(x_ref[...], w_ref[...], preferred_element_type=jnp.float32)
    alpha = jnp.dot(xw, acat_ref[...], preferred_element_type=jnp.float32)
    asrc_ref[...] = alpha[:, :heads]
    adst_ref[...] = alpha[:, heads:]
    ones = jnp.ones((xw.shape[0], 1), jnp.float32)
    pieces = []
    for h in range(heads):
        pieces.append(xw[:, h * ch:(h + 1) * ch])
        pieces.append(ones)
    # single lane-dense store of the augmented layout
    xw_ref[...] = jnp.concatenate(pieces, axis=1).astype(xw_ref.dtype)


def gat_precompute(x, w, a_cat, *, heads, ch, tile_m, xw_dtype):
    Np, fin = x.shape
    hc = heads * ch
    haug = heads * (ch + 1)
    grid = (Np // tile_m,)
    flops = 2 * Np * fin * hc + 2 * Np * hc * 2 * heads
    bytes_accessed = (4 * (Np * fin + fin * hc + hc * 2 * heads + Np * 2 * heads)
                      + Np * haug * jnp.dtype(xw_dtype).itemsize)
    kern = functools.partial(gat_precompute_kernel, heads=heads, ch=ch)
    return pl.pallas_call(
        kern,
        out_shape=(jax.ShapeDtypeStruct((Np, haug), xw_dtype),
                   jax.ShapeDtypeStruct((Np, heads), jnp.float32),
                   jax.ShapeDtypeStruct((Np, heads), jnp.float32)),
        grid=grid,
        in_specs=[
            pl.BlockSpec((tile_m, fin), lambda i: (i, 0)),   # x row tile
            pl.BlockSpec((fin, hc), lambda i: (0, 0)),       # W (full)
            pl.BlockSpec((hc, 2 * heads), lambda i: (0, 0)),  # [a_src | a_dst] (full)
        ],
        out_specs=(pl.BlockSpec((tile_m, haug), lambda i: (i, 0)),
                   pl.BlockSpec((tile_m, heads), lambda i: (i, 0)),
                   pl.BlockSpec((tile_m, heads), lambda i: (i, 0))),
        compiler_params=pltpu.CompilerParams(
            dimension_semantics=("parallel",),
            vmem_limit_bytes=_VMEM_LIMIT),
        cost_estimate=pl.CostEstimate(flops=flops, transcendentals=0,
                                      bytes_accessed=bytes_accessed),
    )(x, w, a_cat)


# ----------------------------------------------------------------------------
# Kernel 2: online-softmax attention + aggregation
#   grid = (row tiles, column tiles); column axis is the online-softmax sweep.
# ----------------------------------------------------------------------------
def gat_attention_kernel(blkmap_ref,                       # scalar-prefetch (SMEM)
                         adst_ref, asrcT_ref, xw_ref, adj_ref, bias_ref,
                         out_ref, m_scr, acc_scr, *,
                         heads, ch, concat, negative_slope, final, score_dtype):
    # adst:  [tm, H]         alpha_dst for this destination-row tile
    # asrcT: [H, tn]         alpha_src^T for this source-column tile
    # xw:    [tn, H*(C+1)]   augmented features [xw_h | 1] per head (score_dtype)
    # adj:   [tm, tn] int8   adj[i, j] != 0 iff edge j -> i
    # scratch: m_scr [H, tm, 1] f32 running max; acc_scr [H, tm, C+1] f32 [acc | denom]
    i = pl.program_id(0)
    j = pl.program_id(1)
    n_col = pl.num_programs(1)
    caug = ch + 1
    sd = score_dtype

    @pl.when(j == 0)
    def _init():
        m_scr[...] = jnp.full(m_scr.shape, -1e30, m_scr.dtype)
        acc_scr[...] = jnp.zeros(acc_scr.shape, acc_scr.dtype)

    @pl.when(blkmap_ref[i * n_col + j] > 0)       # skip all-zero adjacency blocks
    def _compute():
        neg_inf = jnp.asarray(-1e30, dtype=sd)
        zero = jnp.asarray(0.0, dtype=sd)
        # additive mask, built once per block (hoisted out of the head loop)
        mask_bias = jnp.where(adj_ref[...] != 0, zero, neg_inf)     # [tm, tn]

        adst = adst_ref[...].astype(sd)            # [tm, H]
        asrcT = asrcT_ref[...].astype(sd)          # [H, tn]
        xw = xw_ref[...]                           # [tn, H*(C+1)]  (score_dtype)

        for h in range(heads):                     # small & static -> unrolled
            e = adst[:, h:h + 1] + asrcT[h:h + 1, :]           # [tm, tn]
            e = jnp.maximum(e, negative_slope * e)             # LeakyReLU (0<slope<1)
            e = e + mask_bias
            m_prev = m_scr[h]                                  # [tm, 1] f32
            m_blk = jnp.max(e, axis=1, keepdims=True).astype(jnp.float32)
            m_new = jnp.maximum(m_prev, m_blk)
            alpha = jnp.exp(m_prev - m_new)                    # rescale factor, f32
            p = jnp.exp(e - m_new.astype(sd))                  # [tm, tn]; masked -> 0
            agg = jnp.dot(p, xw[:, h * caug:(h + 1) * caug],
                          preferred_element_type=jnp.float32)  # [tm, C+1] = [acc|denom]
            acc_scr[h] = alpha * acc_scr[h] + agg
            m_scr[h] = m_new

    @pl.when(j == n_col - 1)
    def _finalize():
        bias = bias_ref[...]
        outs = []
        for h in range(heads):
            acc_h = acc_scr[h]                                 # [tm, C+1] f32
            num = acc_h[:, :ch]
            den = acc_h[:, ch:ch + 1]
            # den == 0 only for fully padded / isolated rows (sliced off / never read)
            inv = jnp.where(den > 0, pl.reciprocal(den, approx=False), 0.0)
            outs.append(num * inv)
        if concat:
            out = jnp.concatenate(outs, axis=1) + bias         # one lane-dense store
        else:
            out = outs[0]
            for h in range(1, heads):
                out = out + outs[h]
            out = out * (1.0 / heads) + bias                   # mean over heads
            if final:
                # ELU (alpha=1), then log_softmax along dim=1 (classes per node)
                out = jnp.where(out > 0, out, jnp.exp(jnp.minimum(out, 0.0)) - 1.0)
                mx = jnp.max(out, axis=1, keepdims=True)
                z = out - mx
                lse = jnp.log(jnp.sum(jnp.exp(z), axis=1, keepdims=True))
                out = z - lse
        out_ref[...] = out.astype(out_ref.dtype)


def _expand_att(att):
    """[H, C] attention vectors -> block-diagonal [H*C, H] so xw @ m gives per-head scores."""
    H, C = att.shape
    eye = jnp.eye(H, dtype=att.dtype)
    return (att[:, :, None] * eye[:, None, :]).reshape(H * C, H)


def gat_layer(x, w, att_src, att_dst, bias, adj_i8, blkmap, *, heads, ch, concat,
              negative_slope=0.2, final=False, tile_m=256, tile_n=512,
              score_dtype=jnp.float32):
    assert not (concat and final)
    Np = x.shape[0]                           # already padded
    assert Np % tile_m == 0 and Np % tile_n == 0
    hc = heads * ch
    caug = ch + 1
    haug = heads * caug
    out_dim = hc if concat else ch

    asrc_mat = _expand_att(att_src.astype(jnp.float32))
    adst_mat = _expand_att(att_dst.astype(jnp.float32))
    a_cat = jnp.concatenate([asrc_mat, adst_mat], axis=1)      # [H*C, 2H]

    xw_aug, alpha_src, alpha_dst = gat_precompute(
        x.astype(jnp.float32), w.astype(jnp.float32), a_cat,
        heads=heads, ch=ch, tile_m=tile_m, xw_dtype=score_dtype)
    alpha_src_t = alpha_src.T                                  # [H, Np] (O(N*H), cheap)

    bias2 = bias.reshape(1, out_dim).astype(jnp.float32)

    n_row = Np // tile_m
    n_col = Np // tile_n

    kern = functools.partial(gat_attention_kernel, heads=heads, ch=ch, concat=concat,
                             negative_slope=negative_slope, final=final,
                             score_dtype=score_dtype)

    xw_bytes = jnp.dtype(score_dtype).itemsize
    flops = 2 * Np * Np * haug + 6 * Np * Np * heads
    transcendentals = Np * Np * heads
    bytes_accessed = (Np * Np                                  # int8 adjacency
                      + n_row * Np * haug * xw_bytes           # xw streamed per row tile
                      + n_row * Np * heads * 4                 # alpha_src^T per row tile
                      + Np * heads * 4 + Np * out_dim * 4)

    # NOTE: with column tiling there are no large constant-index resident inputs left
    # (adst / bias are KB-scale), so no pl.Buffered(1) single-buffering is needed.
    grid_spec = pltpu.PrefetchScalarGridSpec(
        num_scalar_prefetch=1,
        grid=(n_row, n_col),
        in_specs=[
            pl.BlockSpec((tile_m, heads), lambda i, j, bm: (i, 0)),    # alpha_dst
            pl.BlockSpec((heads, tile_n), lambda i, j, bm: (0, j)),    # alpha_src^T
            pl.BlockSpec((tile_n, haug), lambda i, j, bm: (j, 0)),     # xw_aug col tile
            pl.BlockSpec((tile_m, tile_n), lambda i, j, bm: (i, j)),   # adj block (int8)
            pl.BlockSpec((1, out_dim), lambda i, j, bm: (0, 0)),       # bias
        ],
        out_specs=pl.BlockSpec((tile_m, out_dim), lambda i, j, bm: (i, 0)),
        scratch_shapes=[
            pltpu.VMEM((heads, tile_m, 1), jnp.float32),       # running per-head max
            pltpu.VMEM((heads, tile_m, caug), jnp.float32),    # running [acc | denom]
        ],
    )

    return pl.pallas_call(
        kern,
        out_shape=jax.ShapeDtypeStruct((Np, out_dim), jnp.float32),
        grid_spec=grid_spec,
        compiler_params=pltpu.CompilerParams(
            dimension_semantics=("parallel", "arbitrary"),
            vmem_limit_bytes=_VMEM_LIMIT),
        cost_estimate=pl.CostEstimate(flops=flops, transcendentals=transcendentals,
                                      bytes_accessed=bytes_accessed),
    )(blkmap, alpha_dst, alpha_src_t, xw_aug, adj_i8, bias2)


# ----------------------------------------------------------------------------
# Full tgGAT forward (inference: dropouts are identity)
# ----------------------------------------------------------------------------
def tg_gat_forward(x, adj, params, *, hidden_dim, output_dim, heads,
                   tile_m=256, tile_n=512, score_dtype=jnp.float32):
    N = x.shape[0]
    assert tile_m % 32 == 0 and tile_n % 128 == 0
    assert (tile_m & (tile_m - 1)) == 0 and (tile_n & (tile_n - 1)) == 0
    blk = max(tile_m, tile_n)
    Np = _round_up(max(N, blk), blk)
    # v7x megacore: keep an even number of row tiles (both TensorCores busy) whenever
    # it costs at most one extra tile of padding.
    if (Np // tile_m) % 2 == 1 and Np > tile_m:
        Np = _round_up(Np, 2 * tile_m)

    # Pad nodes; padded rows/cols have no edges and are sliced off at the end.
    x_p = jnp.zeros((Np, x.shape[1]), jnp.float32).at[:N, :].set(x.astype(jnp.float32))
    adj_i8 = jnp.zeros((Np, Np), jnp.int8).at[:N, :N].set((adj > 0).astype(jnp.int8))

    # Block-sparsity map shared by both layers: 1 iff a [tile_m, tile_n] block has an edge.
    n_row, n_col = Np // tile_m, Np // tile_n
    blkmap = jnp.any(adj_i8.reshape(n_row, tile_m, n_col, tile_n) != 0,
                     axis=(1, 3)).astype(jnp.int32).reshape(-1)

    # Layer "attentions": 8 single-head GATConvs concat -> one 8-head GAT, concat=True.
    h = gat_layer(x_p, params["w1"], params["asrc1"], params["adst1"], params["b1"],
                  adj_i8, blkmap, heads=8, ch=hidden_dim, concat=True,
                  tile_m=tile_m, tile_n=tile_n, score_dtype=score_dtype)
    # conv_out: multi-head, concat=False (mean), fused ELU + log_softmax.
    out = gat_layer(h, params["w2"], params["asrc2"], params["adst2"], params["b2"],
                    adj_i8, blkmap, heads=heads, ch=output_dim, concat=False, final=True,
                    tile_m=tile_m, tile_n=tile_n, score_dtype=score_dtype)
    return out[:N]


# ----------------------------------------------------------------------------
# Pure-JAX dense reference (correctness check)
# ----------------------------------------------------------------------------
def _gat_layer_ref(x, w, att_src, att_dst, bias, adj, heads, ch, concat, negative_slope=0.2):
    N = x.shape[0]
    xw = (x @ w).reshape(N, heads, ch)
    a_src = jnp.einsum("nhc,hc->nh", xw, att_src)
    a_dst = jnp.einsum("nhc,hc->nh", xw, att_dst)
    e = a_dst[:, None, :] + a_src[None, :, :]                  # [N, N, H]
    e = jnp.where(e >= 0, e, negative_slope * e)
    e = jnp.where(adj[:, :, None] > 0, e, -1e30)
    e = e - e.max(axis=1, keepdims=True)
    p = jnp.exp(e) * adj[:, :, None]
    attn = p / p.sum(axis=1, keepdims=True)
    out = jnp.einsum("nmh,mhc->nhc", attn, xw)
    if concat:
        return out.reshape(N, heads * ch) + bias
    return out.mean(axis=1) + bias


def tg_gat_ref(x, adj, params, *, hidden_dim, output_dim, heads):
    h = _gat_layer_ref(x, params["w1"], params["asrc1"], params["adst1"], params["b1"],
                       adj, 8, hidden_dim, True)
    o = _gat_layer_ref(h, params["w2"], params["asrc2"], params["adst2"], params["b2"],
                       adj, heads, output_dim, False)
    o = jnp.where(o > 0, o, jnp.exp(jnp.minimum(o, 0.0)) - 1.0)
    return jax.nn.log_softmax(o, axis=1)


# ----------------------------------------------------------------------------
if __name__ == "__main__":
    key = jax.random.PRNGKey(0)
    N, E = 200, 600
    input_dim, hidden_dim, output_dim, heads = 8, 8, 4, 4

    kx, ks, kd, kp = jax.random.split(key, 4)
    x = jax.random.normal(kx, (N, input_dim), dtype=jnp.float32)
    src = jax.random.randint(ks, (E,), 0, N)
    dst = jax.random.randint(kd, (E,), 0, N)
    # dense adjacency with self loops (adj[i, j] = 1 iff edge j -> i)
    adj = jnp.zeros((N, N), jnp.float32).at[dst, src].set(1.0)
    adj = jnp.maximum(adj, jnp.eye(N, dtype=jnp.float32))

    pk = jax.random.split(kp, 8)
    params = {
        "w1":    jax.random.normal(pk[0], (input_dim, 8 * hidden_dim), jnp.float32) * 0.2,
        "asrc1": jax.random.normal(pk[1], (8, hidden_dim), jnp.float32) * 0.2,
        "adst1": jax.random.normal(pk[2], (8, hidden_dim), jnp.float32) * 0.2,
        "b1":    jax.random.normal(pk[3], (8 * hidden_dim,), jnp.float32) * 0.05,
        "w2":    jax.random.normal(pk[4], (8 * hidden_dim, heads * output_dim), jnp.float32) * 0.2,
        "asrc2": jax.random.normal(pk[5], (heads, output_dim), jnp.float32) * 0.2,
        "adst2": jax.random.normal(pk[6], (heads, output_dim), jnp.float32) * 0.2,
        "b2":    jax.random.normal(pk[7], (output_dim,), jnp.float32) * 0.05,
    }

    ref = tg_gat_ref(x, adj, params, hidden_dim=hidden_dim,
                     output_dim=output_dim, heads=heads)

    # f32 path: the 200-node graph pads to 256 -> a 2x2 block grid, exercising the
    # online-softmax column sweep, block-skip map, and pl.when init/finalize paths.
    out = tg_gat_forward(x, adj, params, hidden_dim=hidden_dim, output_dim=output_dim,
                         heads=heads, tile_m=128, tile_n=128)
    out = jax.block_until_ready(out)
    np.testing.assert_allclose(np.asarray(out), np.asarray(ref), atol=1e-4, rtol=1e-4)

    # bf16 score/exp/aggregation fast path (v6e/v7x); max + denominator stay f32.
    out_bf16 = tg_gat_forward(x, adj, params, hidden_dim=hidden_dim, output_dim=output_dim,
                              heads=heads, tile_m=128, tile_n=128,
                              score_dtype=jnp.bfloat16)
    out_bf16 = jax.block_until_ready(out_bf16)
    np.testing.assert_allclose(np.asarray(out_bf16), np.asarray(ref), atol=5e-2, rtol=5e-2)

    print("KERNEL_OK")
</pallas_src>

<mosaic_0001>
module attributes {stable_mosaic.version = 11 : i64} {
  func.func @gat_precompute_kernel(%arg0: i32, %arg1: memref<128x8xf32, #tpu.memory_space<vmem>>, %arg2: memref<8x64xf32, #tpu.memory_space<vmem>>, %arg3: memref<64x16xf32, #tpu.memory_space<vmem>>, %arg4: memref<128x72xf32, #tpu.memory_space<vmem>>, %arg5: memref<128x8xf32, #tpu.memory_space<vmem>>, %arg6: memref<128x8xf32, #tpu.memory_space<vmem>>) attributes {dimension_semantics = [#tpu.dimension_semantics<parallel>], iteration_bounds = array<i64: 2>, scalar_prefetch = 0 : i64, scratch_operands = 0 : i64, tpu.core_type = #tpu.core_type<tc>, window_params = [{transform_indices = @transform_0, window_bounds = array<i64: 128, 8>}, {pipeline_mode = #tpu.pipeline_mode<synchronous>, transform_indices = @transform_1, window_bounds = array<i64: 8, 64>}, {pipeline_mode = #tpu.pipeline_mode<synchronous>, transform_indices = @transform_2, window_bounds = array<i64: 64, 16>}, {transform_indices = @transform_3, window_bounds = array<i64: 128, 72>}, {transform_indices = @transform_4, window_bounds = array<i64: 128, 8>}, {transform_indices = @transform_5, window_bounds = array<i64: 128, 8>}]} {
    %c0 = arith.constant 0 : index
    %c0_0 = arith.constant 0 : index
    %0 = vector.load %arg1[%c0, %c0_0] : memref<128x8xf32, #tpu.memory_space<vmem>>, vector<128x8xf32>
    %c0_1 = arith.constant 0 : index
    %c0_2 = arith.constant 0 : index
    %1 = vector.load %arg2[%c0_1, %c0_2] : memref<8x64xf32, #tpu.memory_space<vmem>>, vector<8x64xf32>
    %cst = arith.constant dense<0.000000e+00> : vector<128x64xf32>
    %2 = tpu.matmul %0, %1, %cst {dimension_numbers = #tpu.dot_dimension_numbers<[1], [0], [0], [1], [0, 0, 1, 1], [], []>} : vector<128x8xf32>, vector<8x64xf32>, vector<128x64xf32> -> vector<128x64xf32>
    %c0_3 = arith.constant 0 : index
    %c0_4 = arith.constant 0 : index
    %3 = vector.load %arg3[%c0_3, %c0_4] : memref<64x16xf32, #tpu.memory_space<vmem>>, vector<64x16xf32>
    %cst_5 = arith.constant dense<0.000000e+00> : vector<128x16xf32>
    %4 = tpu.matmul %2, %3, %cst_5 {dimension_numbers = #tpu.dot_dimension_numbers<[1], [0], [0], [1], [0, 0, 1, 1], [], []>} : vector<128x64xf32>, vector<64x16xf32>, vector<128x16xf32> -> vector<128x16xf32>
    %5 = vector.extract_strided_slice %4 {offsets = [0, 0], sizes = [128, 8], strides = [1, 1]} : vector<128x16xf32> to vector<128x8xf32>
    %c0_6 = arith.constant 0 : index
    %c0_7 = arith.constant 0 : index
    %6 = vector.load %arg5[%c0_6, %c0_7] : memref<128x8xf32, #tpu.memory_space<vmem>>, vector<128x8xf32>
    tpu.vector_store %arg5[%c0_6, %c0_7], %5 {strides = array<i32>} : memref<128x8xf32, #tpu.memory_space<vmem>>, vector<128x8xf32>,
    %7 = vector.extract_strided_slice %4 {offsets = [0, 8], sizes = [128, 8], strides = [1, 1]} : vector<128x16xf32> to vector<128x8xf32>
    %c0_8 = arith.constant 0 : index
    %c0_9 = arith.constant 0 : index
    %8 = vector.load %arg6[%c0_8, %c0_9] : memref<128x8xf32, #tpu.memory_space<vmem>>, vector<128x8xf32>
    tpu.vector_store %arg6[%c0_8, %c0_9], %7 {strides = array<i32>} : memref<128x8xf32, #tpu.memory_space<vmem>>, vector<128x8xf32>,
    %cst_10 = arith.constant 1.000000e+00 : f32
    %9 = vector.broadcast %cst_10 : f32 to vector<128x1xf32>
    %10 = vector.extract_strided_slice %2 {offsets = [0, 0], sizes = [128, 8], strides = [1, 1]} : vector<128x64xf32> to vector<128x8xf32>
    %11 = vector.extract_strided_slice %2 {offsets = [0, 8], sizes = [128, 8], strides = [1, 1]} : vector<128x64xf32> to vector<128x8xf32>
    %12 = vector.extract_strided_slice %2 {offsets = [0, 16], sizes = [128, 8], strides = [1, 1]} : vector<128x64xf32> to vector<128x8xf32>
    %13 = vector.extract_strided_slice %2 {offsets = [0, 24], sizes = [128, 8], strides = [1, 1]} : vector<128x64xf32> to vector<128x8xf32>
    %14 = vector.extract_strided_slice %2 {offsets = [0, 32], sizes = [128, 8], strides = [1, 1]} : vector<128x64xf32> to vector<128x8xf32>
    %15 = vector.extract_strided_slice %2 {offsets = [0, 40], sizes = [128, 8], strides = [1, 1]} : vector<128x64xf32> to vector<128x8xf32>
    %16 = vector.extract_strided_slice %2 {offsets = [0, 48], sizes = [128, 8], strides = [1, 1]} : vector<128x64xf32> to vector<128x8xf32>
    %17 = vector.extract_strided_slice %2 {offsets = [0, 56], sizes = [128, 8], strides = [1, 1]} : vector<128x64xf32> to vector<128x8xf32>
    %18 = tpu.concatenate %10, %9, %11, %9, %12, %9, %13, %9, %14, %9, %15, %9, %16, %9, %17, %9 in 1 : vector<128x8xf32>, vector<128x1xf32>, vector<128x8xf32>, vector<128x1xf32>, vector<128x8xf32>, vector<128x1xf32>, vector<128x8xf32>, vector<128x1xf32>, vector<128x8xf32>, vector<128x1xf32>, vector<128x8xf32>, vector<128x1xf32>, vector<128x8xf32>, vector<128x1xf32>, vector<128x8xf32>, vector<128x1xf32> -> vector<128x72xf32>
    %c0_11 = arith.constant 0 : index
    %c0_12 = arith.constant 0 : index
    %19 = vector.load %arg4[%c0_11, %c0_12] : memref<128x72xf32, #tpu.memory_space<vmem>>, vector<128x72xf32>
    tpu.vector_store %arg4[%c0_11, %c0_12], %18 {strides = array<i32>} : memref<128x72xf32, #tpu.memory_space<vmem>>, vector<128x72xf32>,
    return
  }
  func.func @transform_0(%arg0: i32) -> (i32, i32) {
    %c0_i32 = arith.constant 0 : i32
    %c0_i32_0 = arith.constant 0 : i32
    return %arg0, %c0_i32 : i32, i32
  }
  func.func @transform_1(%arg0: i32) -> (i32, i32) {
    %c0_i32 = arith.constant 0 : i32
    %c0_i32_0 = arith.constant 0 : i32
    %c0_i32_1 = arith.constant 0 : i32
    return %c0_i32, %c0_i32_0 : i32, i32
  }
  func.func @transform_2(%arg0: i32) -> (i32, i32) {
    %c0_i32 = arith.constant 0 : i32
    %c0_i32_0 = arith.constant 0 : i32
    %c0_i32_1 = arith.constant 0 : i32
    return %c0_i32, %c0_i32_0 : i32, i32
  }
  func.func @transform_3(%arg0: i32) -> (i32, i32) {
    %c0_i32 = arith.constant 0 : i32
    %c0_i32_0 = arith.constant 0 : i32
    return %arg0, %c0_i32 : i32, i32
  }
  func.func @transform_4(%arg0: i32) -> (i32, i32) {
    %c0_i32 = arith.constant 0 : i32
    %c0_i32_0 = arith.constant 0 : i32
    return %arg0, %c0_i32 : i32, i32
  }
  func.func @transform_5(%arg0: i32) -> (i32, i32) {
    %c0_i32 = arith.constant 0 : i32
    %c0_i32_0 = arith.constant 0 : i32
    return %arg0, %c0_i32 : i32, i32
  }
}

</mosaic_0001>

<llo_original>
// kernel: tpu_custom_call.1
$region0: #{tpu_custom_call.1}
  #allocation0 [shape = 'u32[]', space=smem, size = 0x4, offset = 0x4, fixed_abs, tag = 'smem constant byte address 0x4 - core index']
  #allocation1 [shape = 'u32[144,128]{1,0:T(1,128)}', space=vmem, size = 0x12000, scoped, tag = 'internal scratch']
  %s0 = inlined_call_operand.vmem [shape: f32[256,8], index: 0, kind: input, shape index: {}]
  %s1 = inlined_call_operand.vmem [shape: f32[8,64], index: 1, kind: input, shape index: {}]
  %s2 = inlined_call_operand.vmem [shape: f32[64,16], index: 2, kind: input, shape index: {}]
  %s3 = inlined_call_operand.vmem [shape: f32[256,72], index: 3, kind: output, shape index: {0}]
  %s4 = inlined_call_operand.vmem [shape: f32[256,8], index: 4, kind: output, shape index: {1}]
  %s5 = inlined_call_operand.vmem [shape: f32[256,8], index: 5, kind: output, shape index: {2}]
  %6 = xla_tuple %s3, %s4, %s5
  %s7 = sld [smem:[#allocation0]]
  $region61: #{tpu_custom_call.1} parent=0
    _
  %s9 = ssub.s32 1, %s7
  %s10 = scalar_select 0, %s9, %s7
  loop: start=0, step=1, limit=4
  $region2: #{tpu_custom_call.1} parent=0 // loop_pre_header
    _
  $region3: #{tpu_custom_call.1} parent=0 // loop_header
    %s12 = sphi 0, %s16
    %p13 = scmp.ge.s32.totalorder %s12, 4
    %s22 = sphi 0, %s24
    %s25 = sphi 0, %s22
    %s26 = sphi 0, %s25
    %s42 = sphi 0, %s26
    %s46 = sphi 0, %s46
    %s48 = sphi 0, %s46
    %s49 = sphi 0, %s48
    %s63 = sphi 0, %s49
    %s67 = sphi 0, %s67
    %s69 = sphi 0, %s67
    %s70 = sphi 0, %s69
    %s84 = sphi 0, %s70
    %s90 = sphi 0, %s92
    %s93 = sphi 0, %s90
    %s94 = sphi 0, %s93
    %s110 = sphi 0, %s94
    %s116 = sphi 0, %s118
    %s119 = sphi 0, %s116
    %s120 = sphi 0, %s119
    %s136 = sphi 0, %s120
    %s142 = sphi 0, %s144
    %s145 = sphi 0, %s142
    %s146 = sphi 0, %s145
    %s162 = sphi 0, %s146
  $region4: #{tpu_custom_call.1} parent=0 // loop_header_branch
    %15 = sbr.rel (%p13) target = $region8
  $region5: #{tpu_custom_call.1} parent=0 // loop_body
    %s17 = ssub.s32 %s12, 1
    %s18 = ssub.s32 %s12, 2
    %s19 = sadd.s32 %s12, 1
    %s20 = ssub.s32 %s12, %s19
    %p21 = scmp.eq.s32.totalorder %s20, 0
    %s23 = sadd.s32 %s22, 1
    %s24 = scalar_select %p21, %s22, %s23
    %p27 = pneg %p21
    %p28 = scmp.eq.s32.totalorder %s12, 1
    %p29 = por %p27, %p28
    %p30 = scmp.ne.s32.totalorder %s22, %s25
    %p31 = scmp.eq.s32.totalorder %s12, 0
    %p32 = por %p30, %p31
    %p33 = scmp.ne.s32.totalorder %s22, %s25
    %p34 = scmp.eq.s32.totalorder %s17, 1
    %p35 = por %p33, %p34
    %p36 = scmp.ne.s32.totalorder %s25, %s26
    %p37 = scmp.eq.s32.totalorder %s17, 0
    %p38 = por %p36, %p37
    %p39 = scmp.ne.s32.totalorder %s25, %s26
    %p40 = scmp.eq.s32.totalorder %s18, 1
    %p41 = por %p39, %p40
    %p43 = scmp.ne.s32.totalorder %s26, %s42
    %p44 = scmp.eq.s32.totalorder %s18, 0
    %p45 = por %p43, %p44
    %s47 = sadd.s32 %s46, 1
    %p50 = scmp.eq.s32.totalorder %s12, 1
    %p51 = scmp.ne.s32.totalorder %s46, %s48
    %p52 = scmp.eq.s32.totalorder %s12, 0
    %p53 = por %p51, %p52
    %p54 = scmp.ne.s32.totalorder %s46, %s48
    %p55 = scmp.eq.s32.totalorder %s17, 1
    %p56 = por %p54, %p55
    %p57 = scmp.ne.s32.totalorder %s48, %s49
    %p58 = scmp.eq.s32.totalorder %s17, 0
    %p59 = por %p57, %p58
    %p60 = scmp.ne.s32.totalorder %s48, %s49
    %p61 = scmp.eq.s32.totalorder %s18, 1
    %p62 = por %p60, %p61
    %p64 = scmp.ne.s32.totalorder %s49, %s63
    %p65 = scmp.eq.s32.totalorder %s18, 0
    %p66 = por %p64, %p65
    %s68 = sadd.s32 %s67, 1
    %p71 = scmp.eq.s32.totalorder %s12, 1
    %p72 = scmp.ne.s32.totalorder %s67, %s69
    %p73 = scmp.eq.s32.totalorder %s12, 0
    %p74 = por %p72, %p73
    %p75 = scmp.ne.s32.totalorder %s67, %s69
    %p76 = scmp.eq.s32.totalorder %s17, 1
    %p77 = por %p75, %p76
    %p78 = scmp.ne.s32.totalorder %s69, %s70
    %p79 = scmp.eq.s32.totalorder %s17, 0
    %p80 = por %p78, %p79
    %p81 = scmp.ne.s32.totalorder %s69, %s70
    %p82 = scmp.eq.s32.totalorder %s18, 1
    %p83 = por %p81, %p82
    %p85 = scmp.ne.s32.totalorder %s70, %s84
    %p86 = scmp.eq.s32.totalorder %s18, 0
    %p87 = por %p85, %p86
    %s88 = ssub.s32 %s12, %s19
    %p89 = scmp.eq.s32.totalorder %s88, 0
    %s91 = sadd.s32 %s90, 1
    %s92 = scalar_select %p89, %s90, %s91
    %p95 = pneg %p89
    %p96 = scmp.eq.s32.totalorder %s12, 1
    %p97 = por %p95, %p96
    %p98 = scmp.ne.s32.totalorder %s90, %s93
    %p99 = scmp.eq.s32.totalorder %s12, 0
    %p100 = por %p98, %p99
    %p101 = scmp.ne.s32.totalorder %s90, %s93
    %p102 = scmp.eq.s32.totalorder %s17, 1
    %p103 = por %p101, %p102
    %p104 = scmp.ne.s32.totalorder %s93, %s94
    %p105 = scmp.eq.s32.totalorder %s17, 0
    %p106 = por %p104, %p105
    %p107 = scmp.ne.s32.totalorder %s93, %s94
    %p108 = scmp.eq.s32.totalorder %s18, 1
    %p109 = por %p107, %p108
    %p111 = scmp.ne.s32.totalorder %s94, %s110
    %p112 = scmp.eq.s32.totalorder %s18, 0
    %p113 = por %p111, %p112
    %s114 = ssub.s32 %s12, %s19
    %p115 = scmp.eq.s32.totalorder %s114, 0
    %s117 = sadd.s32 %s116, 1
    %s118 = scalar_select %p115, %s116, %s117
    %p121 = pneg %p115
    %p122 = scmp.eq.s32.totalorder %s12, 1
    %p123 = por %p121, %p122
    %p124 = scmp.ne.s32.totalorder %s116, %s119
    %p125 = scmp.eq.s32.totalorder %s12, 0
    %p126 = por %p124, %p125
    %p127 = scmp.ne.s32.totalorder %s116, %s119
    %p128 = scmp.eq.s32.totalorder %s17, 1
    %p129 = por %p127, %p128
    %p130 = scmp.ne.s32.totalorder %s119, %s120
    %p131 = scmp.eq.s32.totalorder %s17, 0
    %p132 = por %p130, %p131
    %p133 = scmp.ne.s32.totalorder %s119, %s120
    %p134 = scmp.eq.s32.totalorder %s18, 1
    %p135 = por %p133, %p134
    %p137 = scmp.ne.s32.totalorder %s120, %s136
    %p138 = scmp.eq.s32.totalorder %s18, 0
    %p139 = por %p137, %p138
    %s140 = ssub.s32 %s12, %s19
    %p141 = scmp.eq.s32.totalorder %s140, 0
    %s143 = sadd.s32 %s142, 1
    %s144 = scalar_select %p141, %s142, %s143
    %p147 = pneg %p141
    %p148 = scmp.eq.s32.totalorder %s12, 1
    %p149 = por %p147, %p148
    %p150 = scmp.ne.s32.totalorder %s142, %s145
    %p151 = scmp.eq.s32.totalorder %s12, 0
    %p152 = por %p150, %p151
    %p153 = scmp.ne.s32.totalorder %s142, %s145
    %p154 = scmp.eq.s32.totalorder %s17, 1
    %p155 = por %p153, %p154
    %p156 = scmp.ne.s32.totalorder %s145, %s146
    %p157 = scmp.eq.s32.totalorder %s17, 0
    %p158 = por %p156, %p157
    %p159 = scmp.ne.s32.totalorder %s145, %s146
    %p160 = scmp.eq.s32.totalorder %s18, 1
    %p161 = por %p159, %p160
    %p163 = scmp.ne.s32.totalorder %s146, %s162
    %p164 = scmp.eq.s32.totalorder %s18, 0
    %p165 = por %p163, %p164
    %p166 = scmp.le.s32.totalorder 1, %s12
    %p167 = scmp.lt.s32.totalorder %s12, 3
    %p168 = pnand %p166, %p167
    %p169 = pneg %p168
    // Predicated region
    $region9: #{tpu_custom_call.1} parent=5 // pred_check
      _
    $region10: #{tpu_custom_call.1} parent=5 // pred_check_branch
      %171 = sbr.rel (%p168) target = $region12
    $region11: #{tpu_custom_call.1} parent=5 // pred_region
      %s172 = ssub.s32 %s12, 1
      // Predicated region
      $region13: #{tpu_custom_call.1} parent=11 // pred_check
        %p173 = pneg %p59
      $region14: #{tpu_custom_call.1} parent=11 // pred_check_branch
        %175 = sbr.rel (%p173) target = $region16
      $region15: #{tpu_custom_call.1} parent=11 // pred_region
        _
      $region16: #{tpu_custom_call.1} parent=11 // pred_fallthru
        _
      // Predicated region
      $region17: #{tpu_custom_call.1} parent=11 // pred_check
        %p176 = pneg %p80
      $region18: #{tpu_custom_call.1} parent=11 // pred_check_branch
        %178 = sbr.rel (%p176) target = $region20
      $region19: #{tpu_custom_call.1} parent=11 // pred_region
        _
      $region20: #{tpu_custom_call.1} parent=11 // pred_fallthru
        _
    $region12: #{tpu_custom_call.1} parent=5 // pred_fallthru
      _
    %p179 = scmp.lt.s32.totalorder %s12, 2
    // Predicated region
    $region21: #{tpu_custom_call.1} parent=5 // pred_check
      %p180 = pneg %p179
    $region22: #{tpu_custom_call.1} parent=5 // pred_check_branch
      %182 = sbr.rel (%p180) target = $region24
    $region23: #{tpu_custom_call.1} parent=5 // pred_region
      // Predicated region
      $region25: #{tpu_custom_call.1} parent=23 // pred_check
        %p183 = pneg %p32
      $region26: #{tpu_custom_call.1} parent=23 // pred_check_branch
        %185 = sbr.rel (%p183) target = $region28
      $region27: #{tpu_custom_call.1} parent=23 // pred_region
        %s186 = smul.u32 16, %s12
        %p187 = scmp.lt.s32.totalorder %s186, 31
        %s188 = scalar_select %p187, %s186, 31
        %s189 = smul.addr %s188, 8
        %s190 = scalar_lea.vmem %s0, %s189
        %s191 = smul.u32 16, %s12
      $region28: #{tpu_custom_call.1} parent=23 // pred_fallthru
        _
    $region24: #{tpu_custom_call.1} parent=5 // pred_fallthru
      _
    %p192 = scmp.le.s32.totalorder 1, %s12
    %p193 = scmp.lt.s32.totalorder %s12, 3
    %p194 = pnand %p192, %p193
    %p195 = pneg %p194
    // Predicated region
    $region29: #{tpu_custom_call.1} parent=5 // pred_check
      _
    $region30: #{tpu_custom_call.1} parent=5 // pred_check_branch
      %197 = sbr.rel (%p194) target = $region32
    $region31: #{tpu_custom_call.1} parent=5 // pred_region
      %s198 = ssub.s32 %s12, 1
      %s199 = smul.u32 16, %s17
      %p200 = scmp.lt.s32.totalorder %s199, 31
      %s201 = scalar_select %p200, %s199, 31
      %s202 = smul.addr %s201, 8
      %s203 = scalar_lea.vmem %s0, %s202
      %p204 = pneg %p38
      %p205 = pneg %p35
      %p206 = pneg %p59
      %p207 = pneg %p56
      %p208 = pneg %p80
      %p209 = pneg %p77
      %p210 = pneg %p106
      %p211 = pneg %p103
      %s212 = smul.u32 16, %s17
      %p213 = scmp.lt.s32.totalorder %s212, 31
      %s214 = scalar_select %p213, %s212, 31
      %s215 = smul.addr %s214, 8
      %s216 = scalar_lea.vmem %s3, %s215
      %p217 = pneg %p132
      %p218 = pneg %p129
      %s219 = smul.u32 16, %s17
      %p220 = scmp.lt.s32.totalorder %s219, 31
      %s221 = scalar_select %p220, %s219, 31
      %s222 = smul.addr %s221, 8
      %s223 = scalar_lea.vmem %s4, %s222
      %p224 = pneg %p158
      %p225 = pneg %p155
      %s226 = smul.u32 16, %s17
      %p227 = scmp.lt.s32.totalorder %s226, 31
      %s228 = scalar_select %p227, %s226, 31
      %s229 = smul.addr %s228, 8
      %s230 = scalar_lea.vmem %s5, %s229
      %s231 = smul.u32 16, %s17
      %p232 = scmp.lt.s32.totalorder %s231, 31
      %s233 = scalar_select %p232, %s231, 31
      %s234 = smul.addr %s233, 8
      %s235 = scalar_lea.vmem %s0, %s234
      %s236 = smul.u32 16, %s17
      %s237 = smul.u32 16, %s17
      %p238 = scmp.lt.s32.totalorder %s237, 31
      %s239 = scalar_select %p238, %s237, 31
      %s240 = smul.addr %s239, 8
      %s241 = scalar_lea.vmem %s3, %s240
      %s242 = smul.u32 16, %s17
      %s243 = smul.u32 16, %s17
      %p244 = scmp.lt.s32.totalorder %s243, 31
      %s245 = scalar_select %p244, %s243, 31
      %s246 = smul.addr %s245, 8
      %s247 = scalar_lea.vmem %s4, %s246
      %s248 = smul.u32 16, %s17
      %s249 = smul.u32 16, %s17
      %p250 = scmp.lt.s32.totalorder %s249, 31
      %s251 = scalar_select %p250, %s249, 31
      %s252 = smul.addr %s251, 8
      %s253 = scalar_lea.vmem %s5, %s252
      %s254 = smul.u32 16, %s17
      %v255 = vld [vmem:[%s235] sm:$0xff]
      %v256 = vld [vmem:[%s235 + $0x8] sm:$0xff]
      %v257 = vld [vmem:[%s235 + $0x10] sm:$0xff]
      %v258 = vld [vmem:[%s235 + $0x18] sm:$0xff]
      %v259 = vld [vmem:[%s235 + $0x20] sm:$0xff]
      %v260 = vld [vmem:[%s235 + $0x28] sm:$0xff]
      %v261 = vld [vmem:[%s235 + $0x30] sm:$0xff]
      %v262 = vld [vmem:[%s235 + $0x38] sm:$0xff]
      %v263 = vld [vmem:[%s235 + $0x40] sm:$0xff]
      %v264 = vld [vmem:[%s235 + $0x48] sm:$0xff]
      %v265 = vld [vmem:[%s235 + $0x50] sm:$0xff]
      %v266 = vld [vmem:[%s235 + $0x58] sm:$0xff]
      %v267 = vld [vmem:[%s235 + $0x60] sm:$0xff]
      %v268 = vld [vmem:[%s235 + $0x68] sm:$0xff]
      %v269 = vld [vmem:[%s235 + $0x70] sm:$0xff]
      %v270 = vld [vmem:[%s235 + $0x78] sm:$0xff]
      %v271 = vld [vmem:[%s1] sm:$0xff]
      %vm272 = vcmask 64512
      %v274 = vsel %vm272, %v255, 0
      %v277 = vsel %vm272, %v256, 0
      %v280 = vsel %vm272, %v257, 0
      %v283 = vsel %vm272, %v258, 0
      %v286 = vsel %vm272, %v259, 0
      %v289 = vsel %vm272, %v260, 0
      %v292 = vsel %vm272, %v261, 0
      %v295 = vsel %vm272, %v262, 0
      %v298 = vsel %vm272, %v263, 0
      %v301 = vsel %vm272, %v264, 0
      %v304 = vsel %vm272, %v265, 0
      %v307 = vsel %vm272, %v266, 0
      %v310 = vsel %vm272, %v267, 0
      %v313 = vsel %vm272, %v268, 0
      %v316 = vsel %vm272, %v269, 0
      %v319 = vsel %vm272, %v270, 0
      %321 = vmatprep.subr.mxu0 0.0
      %322 = vmatpush1.msra.mxu0 0.0
      %323 = vmatprep.subr.mxu0 0.0
      %324 = vmatpush1.msra.mxu0 0.0
      %325 = vmatprep.subr.mxu0 0.0
      %326 = vmatpush1.msra.mxu0 0.0
      %327 = vmatprep.subr.mxu0 0.0
      %328 = vmatpush1.msra.mxu0 0.0
      %329 = vmatprep.subr.mxu0 0.0
      %330 = vmatpush1.msra.mxu0 0.0
      %331 = vmatprep.subr.mxu0 0.0
      %332 = vmatpush1.msra.mxu0 0.0
      %333 = vmatprep.subr.mxu0 0.0
      %334 = vmatpush1.msra.mxu0 0.0
      %335 = vmatprep.subr.mxu0 0.0
      %336 = vmatpush1.msra.mxu0 0.0
      %337 = vmatprep.subr.mxu0 0.0
      %338 = vmatpush1.msra.mxu0 0.0
      %339 = vmatprep.subr.mxu0 0.0
      %340 = vmatpush1.msra.mxu0 0.0
      %341 = vmatprep.subr.mxu0 0.0
      %342 = vmatpush1.msra.mxu0 0.0
      %343 = vmatprep.subr.mxu0 0.0
      %344 = vmatpush1.msra.mxu0 0.0
      %345 = vmatprep.subr.mxu0 0.0
      %346 = vmatpush1.msra.mxu0 0.0
      %347 = vmatprep.subr.mxu0 0.0
      %348 = vmatpush1.msra.mxu0 0.0
      %349 = vmatprep.subr.mxu0 0.0
      %350 = vmatpush1.msra.mxu0 0.0
      %351 = vmatprep.subr.mxu0 0.0
      %352 = vmatpush1.msra.mxu0 %v271
      %353 = vmatprep.subr.mxu0 0.0
      %354 = vmatpush2.msra.mxu0 0.0
      %355 = vmatprep.subr.mxu0 0.0
      %356 = vmatpush2.msra.mxu0 0.0
      %357 = vmatprep.subr.mxu0 0.0
      %358 = vmatpush2.msra.mxu0 0.0
      %359 = vmatprep.subr.mxu0 0.0
      %360 = vmatpush2.msra.mxu0 0.0
      %361 = vmatprep.subr.mxu0 0.0
      %362 = vmatpush2.msra.mxu0 0.0
      %363 = vmatprep.subr.mxu0 0.0
      %364 = vmatpush2.msra.mxu0 0.0
      %365 = vmatprep.subr.mxu0 0.0
      %366 = vmatpush2.msra.mxu0 0.0
      %367 = vmatprep.subr.mxu0 0.0
      %368 = vmatpush2.msra.mxu0 0.0
      %369 = vmatprep.subr.mxu0 0.0
      %370 = vmatpush2.msra.mxu0 0.0
      %371 = vmatprep.subr.mxu0 0.0
      %372 = vmatpush2.msra.mxu0 0.0
      %373 = vmatprep.subr.mxu0 0.0
      %374 = vmatpush2.msra.mxu0 0.0
      %375 = vmatprep.subr.mxu0 0.0
      %376 = vmatpush2.msra.mxu0 0.0
      %377 = vmatprep.subr.mxu0 0.0
      %378 = vmatpush2.msra.mxu0 0.0
      %379 = vmatprep.subr.mxu0 0.0
      %380 = vmatpush2.msra.mxu0 0.0
      %381 = vmatprep.subr.mxu0 0.0
      %382 = vmatpush2.msra.mxu0 0.0
      %383 = vmatprep.subr.mxu0 0.0
      %384 = vmatpush2.msra.mxu0 0.0
      %385 = vmatprep.mubr.f32.mxu0 0.0
      %386 = vmatmul.mubr.f32.gmra.mxu0 %v274
      %v387 = vpop.f32.mrf.mxu0
      %v388 = vadd.f32 0.0, %v387
      %v389 = vpop.f32.mrf.mxu0
      %390 = vmatprep.mubr.f32.mxu0 0.0
      %391 = vmatmul.mubr.f32.gmra.mxu0 %v277
      %v392 = vpop.f32.mrf.mxu0
      %v393 = vadd.f32 0.0, %v392
      %v394 = vpop.f32.mrf.mxu0
      %395 = vmatprep.mubr.f32.mxu0 0.0
      %396 = vmatmul.mubr.f32.gmra.mxu0 %v280
      %v397 = vpop.f32.mrf.mxu0
      %v398 = vadd.f32 0.0, %v397
      %v399 = vpop.f32.mrf.mxu0
      %400 = vmatprep.mubr.f32.mxu0 0.0
      %401 = vmatmul.mubr.f32.gmra.mxu0 %v283
      %v402 = vpop.f32.mrf.mxu0
      %v403 = vadd.f32 0.0, %v402
      %v404 = vpop.f32.mrf.mxu0
      %405 = vmatprep.mubr.f32.mxu0 0.0
      %406 = vmatmul.mubr.f32.gmra.mxu0 %v286
      %v407 = vpop.f32.mrf.mxu0
      %v408 = vadd.f32 0.0, %v407
      %v409 = vpop.f32.mrf.mxu0
      %410 = vmatprep.mubr.f32.mxu0 0.0
      %411 = vmatmul.mubr.f32.gmra.mxu0 %v289
      %v412 = vpop.f32.mrf.mxu0
      %v413 = vadd.f32 0.0, %v412
      %v414 = vpop.f32.mrf.mxu0
      %415 = vmatprep.mubr.f32.mxu0 0.0
      %416 = vmatmul.mubr.f32.gmra.mxu0 %v292
      %v417 = vpop.f32.mrf.mxu0
      %v418 = vadd.f32 0.0, %v417
      %v419 = vpop.f32.mrf.mxu0
      %420 = vmatprep.mubr.f32.mxu0 0.0
      %421 = vmatmul.mubr.f32.gmra.mxu0 %v295
      %v422 = vpop.f32.mrf.mxu0
      %v423 = vadd.f32 0.0, %v422
      %v424 = vpop.f32.mrf.mxu0
      %425 = vmatprep.mubr.f32.mxu0 0.0
      %426 = vmatmul.mubr.f32.gmra.mxu0 %v298
      %v427 = vpop.f32.mrf.mxu0
      %v428 = vadd.f32 0.0, %v427
      %v429 = vpop.f32.mrf.mxu0
      %430 = vmatprep.mubr.f32.mxu0 0.0
      %431 = vmatmul.mubr.f32.gmra.mxu0 %v301
      %v432 = vpop.f32.mrf.mxu0
      %v433 = vadd.f32 0.0, %v432
      %v434 = vpop.f32.mrf.mxu0
      %435 = vmatprep.mubr.f32.mxu0 0.0
      %436 = vmatmul.mubr.f32.gmra.mxu0 %v304
      %v437 = vpop.f32.mrf.mxu0
      %v438 = vadd.f32 0.0, %v437
      %v439 = vpop.f32.mrf.mxu0
      %440 = vmatprep.mubr.f32.mxu0 0.0
      %441 = vmatmul.mubr.f32.gmra.mxu0 %v307
      %v442 = vpop.f32.mrf.mxu0
      %v443 = vadd.f32 0.0, %v442
      %v444 = vpop.f32.mrf.mxu0
      %445 = vmatprep.mubr.f32.mxu0 0.0
      %446 = vmatmul.mubr.f32.gmra.mxu0 %v310
      %v447 = vpop.f32.mrf.mxu0
      %v448 = vadd.f32 0.0, %v447
      %v449 = vpop.f32.mrf.mxu0
      %450 = vmatprep.mubr.f32.mxu0 0.0
      %451 = vmatmul.mubr.f32.gmra.mxu0 %v313
      %v452 = vpop.f32.mrf.mxu0
      %v453 = vadd.f32 0.0, %v452
      %v454 = vpop.f32.mrf.mxu0
      %455 = vmatprep.mubr.f32.mxu0 0.0
      %456 = vmatmul.mubr.f32.gmra.mxu0 %v316
      %v457 = vpop.f32.mrf.mxu0
      %v458 = vadd.f32 0.0, %v457
      %v459 = vpop.f32.mrf.mxu0
      %460 = vmatprep.mubr.f32.mxu0 0.0
      %461 = vmatmul.mubr.f32.gmra.mxu0 %v319
      %v462 = vpop.f32.mrf.mxu0
      %v463 = vadd.f32 0.0, %v462
      %v464 = vpop.f32.mrf.mxu0
      %465 = vdwg.mxu0
      %v466 = vld [vmem:[%s2] sm:$0xff]
      %v467 = vld [vmem:[%s2 + $0x8] sm:$0xff]
      %v468 = vld [vmem:[%s2 + $0x10] sm:$0xff]
      %v469 = vld [vmem:[%s2 + $0x18] sm:$0xff]
      %v470 = vld [vmem:[%s2 + $0x20] sm:$0xff]
      %v471 = vld [vmem:[%s2 + $0x28] sm:$0xff]
      %v472 = vld [vmem:[%s2 + $0x30] sm:$0xff]
      %v473 = vld [vmem:[%s2 + $0x38] sm:$0xff]
      %vm474 = vcmask 523264
      %v476 = vsel %vm474, %v388, 0
      %v479 = vsel %vm474, %v393, 0
      %v482 = vsel %vm474, %v398, 0
      %v485 = vsel %vm474, %v403, 0
      %v488 = vsel %vm474, %v408, 0
      %v491 = vsel %vm474, %v413, 0
      %v494 = vsel %vm474, %v418, 0
      %v497 = vsel %vm474, %v423, 0
      %v500 = vsel %vm474, %v428, 0
      %v503 = vsel %vm474, %v433, 0
      %v506 = vsel %vm474, %v438, 0
      %v509 = vsel %vm474, %v443, 0
      %v512 = vsel %vm474, %v448, 0
      %v515 = vsel %vm474, %v453, 0
      %v518 = vsel %vm474, %v458, 0
      %v521 = vsel %vm474, %v463, 0
      %523 = vmatprep.subr.mxu0 0.0
      %524 = vmatpush1.msra.mxu0 0.0
      %525 = vmatprep.subr.mxu0 0.0
      %526 = vmatpush1.msra.mxu0 0.0
      %527 = vmatprep.subr.mxu0 0.0
      %528 = vmatpush1.msra.mxu0 0.0
      %529 = vmatprep.subr.mxu0 0.0
      %530 = vmatpush1.msra.mxu0 0.0
      %531 = vmatprep.subr.mxu0 0.0
      %532 = vmatpush1.msra.mxu0 0.0
      %533 = vmatprep.subr.mxu0 0.0
      %534 = vmatpush1.msra.mxu0 0.0
      %535 = vmatprep.subr.mxu0 0.0
      %536 = vmatpush1.msra.mxu0 0.0
      %537 = vmatprep.subr.mxu0 0.0
      %538 = vmatpush1.msra.mxu0 0.0
      %539 = vmatprep.subr.mxu0 0.0
      %540 = vmatpush1.msra.mxu0 %v473
      %541 = vmatprep.subr.mxu0 0.0
      %542 = vmatpush1.msra.mxu0 %v472
      %543 = vmatprep.subr.mxu0 0.0
      %544 = vmatpush1.msra.mxu0 %v471
      %545 = vmatprep.subr.mxu0 0.0
      %546 = vmatpush1.msra.mxu0 %v470
      %547 = vmatprep.subr.mxu0 0.0
      %548 = vmatpush1.msra.mxu0 %v469
      %549 = vmatprep.subr.mxu0 0.0
      %550 = vmatpush1.msra.mxu0 %v468
      %551 = vmatprep.subr.mxu0 0.0
      %552 = vmatpush1.msra.mxu0 %v467
      %553 = vmatprep.subr.mxu0 0.0
      %554 = vmatpush1.msra.mxu0 %v466
      %555 = vmatprep.subr.mxu0 0.0
      %556 = vmatpush2.msra.mxu0 0.0
      %557 = vmatprep.subr.mxu0 0.0
      %558 = vmatpush2.msra.mxu0 0.0
      %559 = vmatprep.subr.mxu0 0.0
      %560 = vmatpush2.msra.mxu0 0.0
      %561 = vmatprep.subr.mxu0 0.0
      %562 = vmatpush2.msra.mxu0 0.0
      %563 = vmatprep.subr.mxu0 0.0
      %564 = vmatpush2.msra.mxu0 0.0
      %565 = vmatprep.subr.mxu0 0.0
      %566 = vmatpush2.msra.mxu0 0.0
      %567 = vmatprep.subr.mxu0 0.0
      %568 = vmatpush2.msra.mxu0 0.0
      %569 = vmatprep.subr.mxu0 0.0
      %570 = vmatpush2.msra.mxu0 0.0
      %571 = vmatprep.subr.mxu0 0.0
      %572 = vmatpush2.msra.mxu0 0.0
      %573 = vmatprep.subr.mxu0 0.0
      %574 = vmatpush2.msra.mxu0 0.0
      %575 = vmatprep.subr.mxu0 0.0
      %576 = vmatpush2.msra.mxu0 0.0
      %577 = vmatprep.subr.mxu0 0.0
      %578 = vmatpush2.msra.mxu0 0.0
      %579 = vmatprep.subr.mxu0 0.0
      %580 = vmatpush2.msra.mxu0 0.0
      %581 = vmatprep.subr.mxu0 0.0
      %582 = vmatpush2.msra.mxu0 0.0
      %583 = vmatprep.subr.mxu0 0.0
      %584 = vmatpush2.msra.mxu0 0.0
      %585 = vmatprep.subr.mxu0 0.0
      %586 = vmatpush2.msra.mxu0 0.0
      %587 = vmatprep.mubr.f32.mxu0 0.0
      %588 = vmatmul.mubr.f32.gmra.mxu0 %v476
      %v589 = vpop.f32.mrf.mxu0
      %v590 = vadd.f32 0.0, %v589
      %v591 = vpop.f32.mrf.mxu0
      %592 = vmatprep.mubr.f32.mxu0 0.0
      %593 = vmatmul.mubr.f32.gmra.mxu0 %v479
      %v594 = vpop.f32.mrf.mxu0
      %v595 = vadd.f32 0.0, %v594
      %v596 = vpop.f32.mrf.mxu0
      %597 = vmatprep.mubr.f32.mxu0 0.0
      %598 = vmatmul.mubr.f32.gmra.mxu0 %v482
      %v599 = vpop.f32.mrf.mxu0
      %v600 = vadd.f32 0.0, %v599
      %v601 = vpop.f32.mrf.mxu0
      %602 = vmatprep.mubr.f32.mxu0 0.0
      %603 = vmatmul.mubr.f32.gmra.mxu0 %v485
      %v604 = vpop.f32.mrf.mxu0
      %v605 = vadd.f32 0.0, %v604
      %v606 = vpop.f32.mrf.mxu0
      %607 = vmatprep.mubr.f32.mxu0 0.0
      %608 = vmatmul.mubr.f32.gmra.mxu0 %v488
      %v609 = vpop.f32.mrf.mxu0
      %v610 = vadd.f32 0.0, %v609
      %v611 = vpop.f32.mrf.mxu0
      %612 = vmatprep.mubr.f32.mxu0 0.0
      %613 = vmatmul.mubr.f32.gmra.mxu0 %v491
      %v614 = vpop.f32.mrf.mxu0
      %v615 = vadd.f32 0.0, %v614
      %v616 = vpop.f32.mrf.mxu0
      %617 = vmatprep.mubr.f32.mxu0 0.0
      %618 = vmatmul.mubr.f32.gmra.mxu0 %v494
      %v619 = vpop.f32.mrf.mxu0
      %v620 = vadd.f32 0.0, %v619
      %v621 = vpop.f32.mrf.mxu0
      %622 = vmatprep.mubr.f32.mxu0 0.0
      %623 = vmatmul.mubr.f32.gmra.mxu0 %v497
      %v624 = vpop.f32.mrf.mxu0
      %v625 = vadd.f32 0.0, %v624
      %v626 = vpop.f32.mrf.mxu0
      %627 = vmatprep.mubr.f32.mxu0 0.0
      %628 = vmatmul.mubr.f32.gmra.mxu0 %v500
      %v629 = vpop.f32.mrf.mxu0
      %v630 = vadd.f32 0.0, %v629
      %v631 = vpop.f32.mrf.mxu0
      %632 = vmatprep.mubr.f32.mxu0 0.0
      %633 = vmatmul.mubr.f32.gmra.mxu0 %v503
      %v634 = vpop.f32.mrf.mxu0
      %v635 = vadd.f32 0.0, %v634
      %v636 = vpop.f32.mrf.mxu0
      %637 = vmatprep.mubr.f32.mxu0 0.0
      %638 = vmatmul.mubr.f32.gmra.mxu0 %v506
      %v639 = vpop.f32.mrf.mxu0
      %v640 = vadd.f32 0.0, %v639
      %v641 = vpop.f32.mrf.mxu0
      %642 = vmatprep.mubr.f32.mxu0 0.0
      %643 = vmatmul.mubr.f32.gmra.mxu0 %v509
      %v644 = vpop.f32.mrf.mxu0
      %v645 = vadd.f32 0.0, %v644
      %v646 = vpop.f32.mrf.mxu0
      %647 = vmatprep.mubr.f32.mxu0 0.0
      %648 = vmatmul.mubr.f32.gmra.mxu0 %v512
      %v649 = vpop.f32.mrf.mxu0
      %v650 = vadd.f32 0.0, %v649
      %v651 = vpop.f32.mrf.mxu0
      %652 = vmatprep.mubr.f32.mxu0 0.0
      %653 = vmatmul.mubr.f32.gmra.mxu0 %v515
      %v654 = vpop.f32.mrf.mxu0
      %v655 = vadd.f32 0.0, %v654
      %v656 = vpop.f32.mrf.mxu0
      %657 = vmatprep.mubr.f32.mxu0 0.0
      %658 = vmatmul.mubr.f32.gmra.mxu0 %v518
      %v659 = vpop.f32.mrf.mxu0
      %v660 = vadd.f32 0.0, %v659
      %v661 = vpop.f32.mrf.mxu0
      %662 = vmatprep.mubr.f32.mxu0 0.0
      %663 = vmatmul.mubr.f32.gmra.mxu0 %v521
      %v664 = vpop.f32.mrf.mxu0
      %v665 = vadd.f32 0.0, %v664
      %v666 = vpop.f32.mrf.mxu0
      %667 = vdwg.mxu0
      %668 = vst.msk [vmem:[%s247] sm:$0xff] %vm272, %v590
      %669 = vst.msk [vmem:[%s247 + $0x8] sm:$0xff] %vm272, %v595
      %670 = vst.msk [vmem:[%s247 + $0x10] sm:$0xff] %vm272, %v600
      %671 = vst.msk [vmem:[%s247 + $0x18] sm:$0xff] %vm272, %v605
      %672 = vst.msk [vmem:[%s247 + $0x20] sm:$0xff] %vm272, %v610
      %673 = vst.msk [vmem:[%s247 + $0x28] sm:$0xff] %vm272, %v615
      %674 = vst.msk [vmem:[%s247 + $0x30] sm:$0xff] %vm272, %v620
      %675 = vst.msk [vmem:[%s247 + $0x38] sm:$0xff] %vm272, %v625
      %676 = vst.msk [vmem:[%s247 + $0x40] sm:$0xff] %vm272, %v630
      %677 = vst.msk [vmem:[%s247 + $0x48] sm:$0xff] %vm272, %v635
      %678 = vst.msk [vmem:[%s247 + $0x50] sm:$0xff] %vm272, %v640
      %679 = vst.msk [vmem:[%s247 + $0x58] sm:$0xff] %vm272, %v645
      %680 = vst.msk [vmem:[%s247 + $0x60] sm:$0xff] %vm272, %v650
      %681 = vst.msk [vmem:[%s247 + $0x68] sm:$0xff] %vm272, %v655
      %682 = vst.msk [vmem:[%s247 + $0x70] sm:$0xff] %vm272, %v660
      %683 = vst.msk [vmem:[%s247 + $0x78] sm:$0xff] %vm272, %v665
      %700 = vrot.lane.b32.xlu0 %v590, 120
      %v701 = vpop.permute.xlu0 %700
      %702 = vrot.lane.b32.xlu0 %v595, 120
      %v703 = vpop.permute.xlu0 %702
      %704 = vrot.lane.b32.xlu0 %v600, 120
      %v705 = vpop.permute.xlu0 %704
      %706 = vrot.lane.b32.xlu0 %v605, 120
      %v707 = vpop.permute.xlu0 %706
      %708 = vrot.lane.b32.xlu0 %v610, 120
      %v709 = vpop.permute.xlu0 %708
      %710 = vrot.lane.b32.xlu0 %v615, 120
      %v711 = vpop.permute.xlu0 %710
      %712 = vrot.lane.b32.xlu0 %v620, 120
      %v713 = vpop.permute.xlu0 %712
      %714 = vrot.lane.b32.xlu0 %v625, 120
      %v715 = vpop.permute.xlu0 %714
      %716 = vrot.lane.b32.xlu0 %v630, 120
      %v717 = vpop.permute.xlu0 %716
      %718 = vrot.lane.b32.xlu0 %v635, 120
      %v719 = vpop.permute.xlu0 %718
      %720 = vrot.lane.b32.xlu0 %v640, 120
      %v721 = vpop.permute.xlu0 %720
      %722 = vrot.lane.b32.xlu0 %v645, 120
      %v723 = vpop.permute.xlu0 %722
      %724 = vrot.lane.b32.xlu0 %v650, 120
      %v725 = vpop.permute.xlu0 %724
      %726 = vrot.lane.b32.xlu0 %v655, 120
      %v727 = vpop.permute.xlu0 %726
      %728 = vrot.lane.b32.xlu0 %v660, 120
      %v729 = vpop.permute.xlu0 %728
      %730 = vrot.lane.b32.xlu0 %v665, 120
      %v731 = vpop.permute.xlu0 %730
      %748 = vst.msk [vmem:[%s253] sm:$0xff] %vm272, %v701
      %749 = vst.msk [vmem:[%s253 + $0x8] sm:$0xff] %vm272, %v703
      %750 = vst.msk [vmem:[%s253 + $0x10] sm:$0xff] %vm272, %v705
      %751 = vst.msk [vmem:[%s253 + $0x18] sm:$0xff] %vm272, %v707
      %752 = vst.msk [vmem:[%s253 + $0x20] sm:$0xff] %vm272, %v709
      %753 = vst.msk [vmem:[%s253 + $0x28] sm:$0xff] %vm272, %v711
      %754 = vst.msk [vmem:[%s253 + $0x30] sm:$0xff] %vm272, %v713
      %755 = vst.msk [vmem:[%s253 + $0x38] sm:$0xff] %vm272, %v715
      %756 = vst.msk [vmem:[%s253 + $0x40] sm:$0xff] %vm272, %v717
      %757 = vst.msk [vmem:[%s253 + $0x48] sm:$0xff] %vm272, %v719
      %758 = vst.msk [vmem:[%s253 + $0x50] sm:$0xff] %vm272, %v721
      %759 = vst.msk [vmem:[%s253 + $0x58] sm:$0xff] %vm272, %v723
      %760 = vst.msk [vmem:[%s253 + $0x60] sm:$0xff] %vm272, %v725
      %761 = vst.msk [vmem:[%s253 + $0x68] sm:$0xff] %vm272, %v727
      %762 = vst.msk [vmem:[%s253 + $0x70] sm:$0xff] %vm272, %v729
      %763 = vst.msk [vmem:[%s253 + $0x78] sm:$0xff] %vm272, %v731
      %764 = vrot.lane.b32.xlu0 %v388, 1
      %v765 = vpop.permute.xlu0 %764
      %766 = vrot.lane.b32.xlu0 %v393, 1
      %v767 = vpop.permute.xlu0 %766
      %768 = vrot.lane.b32.xlu0 %v398, 1
      %v769 = vpop.permute.xlu0 %768
      %770 = vrot.lane.b32.xlu0 %v403, 1
      %v771 = vpop.permute.xlu0 %770
      %772 = vrot.lane.b32.xlu0 %v408, 1
      %v773 = vpop.permute.xlu0 %772
      %774 = vrot.lane.b32.xlu0 %v413, 1
      %v775 = vpop.permute.xlu0 %774
      %776 = vrot.lane.b32.xlu0 %v418, 1
      %v777 = vpop.permute.xlu0 %776
      %778 = vrot.lane.b32.xlu0 %v423, 1
      %v779 = vpop.permute.xlu0 %778
      %780 = vrot.lane.b32.xlu0 %v428, 1
      %v781 = vpop.permute.xlu0 %780
      %782 = vrot.lane.b32.xlu0 %v433, 1
      %v783 = vpop.permute.xlu0 %782
      %784 = vrot.lane.b32.xlu0 %v438, 1
      %v785 = vpop.permute.xlu0 %784
      %786 = vrot.lane.b32.xlu0 %v443, 1
      %v787 = vpop.permute.xlu0 %786
      %788 = vrot.lane.b32.xlu0 %v448, 1
      %v789 = vpop.permute.xlu0 %788
      %790 = vrot.lane.b32.xlu0 %v453, 1
      %v791 = vpop.permute.xlu0 %790
      %792 = vrot.lane.b32.xlu0 %v458, 1
      %v793 = vpop.permute.xlu0 %792
      %794 = vrot.lane.b32.xlu0 %v463, 1
      %v795 = vpop.permute.xlu0 %794
      %812 = vrot.lane.b32.xlu0 %v388, 2
      %v813 = vpop.permute.xlu0 %812
      %814 = vrot.lane.b32.xlu0 %v393, 2
      %v815 = vpop.permute.xlu0 %814
      %816 = vrot.lane.b32.xlu0 %v398, 2
      %v817 = vpop.permute.xlu0 %816
      %818 = vrot.lane.b32.xlu0 %v403, 2
      %v819 = vpop.permute.xlu0 %818
      %820 = vrot.lane.b32.xlu0 %v408, 2
      %v821 = vpop.permute.xlu0 %820
      %822 = vrot.lane.b32.xlu0 %v413, 2
      %v823 = vpop.permute.xlu0 %822
      %824 = vrot.lane.b32.xlu0 %v418, 2
      %v825 = vpop.permute.xlu0 %824
      %826 = vrot.lane.b32.xlu0 %v423, 2
      %v827 = vpop.permute.xlu0 %826
      %828 = vrot.lane.b32.xlu0 %v428, 2
      %v829 = vpop.permute.xlu0 %828
      %830 = vrot.lane.b32.xlu0 %v433, 2
      %v831 = vpop.permute.xlu0 %830
      %832 = vrot.lane.b32.xlu0 %v438, 2
      %v833 = vpop.permute.xlu0 %832
      %834 = vrot.lane.b32.xlu0 %v443, 2
      %v835 = vpop.permute.xlu0 %834
      %836 = vrot.lane.b32.xlu0 %v448, 2
      %v837 = vpop.permute.xlu0 %836
      %838 = vrot.lane.b32.xlu0 %v453, 2
      %v839 = vpop.permute.xlu0 %838
      %840 = vrot.lane.b32.xlu0 %v458, 2
      %v841 = vpop.permute.xlu0 %840
      %842 = vrot.lane.b32.xlu0 %v463, 2
      %v843 = vpop.permute.xlu0 %842
      %860 = vrot.lane.b32.xlu0 %v388, 3
      %v861 = vpop.permute.xlu0 %860
      %862 = vrot.lane.b32.xlu0 %v393, 3
      %v863 = vpop.permute.xlu0 %862
      %864 = vrot.lane.b32.xlu0 %v398, 3
      %v865 = vpop.permute.xlu0 %864
      %866 = vrot.lane.b32.xlu0 %v403, 3
      %v867 = vpop.permute.xlu0 %866
      %868 = vrot.lane.b32.xlu0 %v408, 3
      %v869 = vpop.permute.xlu0 %868
      %870 = vrot.lane.b32.xlu0 %v413, 3
      %v871 = vpop.permute.xlu0 %870
      %872 = vrot.lane.b32.xlu0 %v418, 3
      %v873 = vpop.permute.xlu0 %872
      %874 = vrot.lane.b32.xlu0 %v423, 3
      %v875 = vpop.permute.xlu0 %874
      %876 = vrot.lane.b32.xlu0 %v428, 3
      %v877 = vpop.permute.xlu0 %876
      %878 = vrot.lane.b32.xlu0 %v433, 3
      %v879 = vpop.permute.xlu0 %878
      %880 = vrot.lane.b32.xlu0 %v438, 3
      %v881 = vpop.permute.xlu0 %880
      %882 = vrot.lane.b32.xlu0 %v443, 3
      %v883 = vpop.permute.xlu0 %882
      %884 = vrot.lane.b32.xlu0 %v448, 3
      %v885 = vpop.permute.xlu0 %884
      %886 = vrot.lane.b32.xlu0 %v453, 3
      %v887 = vpop.permute.xlu0 %886
      %888 = vrot.lane.b32.xlu0 %v458, 3
      %v889 = vpop.permute.xlu0 %888
      %890 = vrot.lane.b32.xlu0 %v463, 3
      %v891 = vpop.permute.xlu0 %890
      %908 = vrot.lane.b32.xlu0 %v388, 4
      %v909 = vpop.permute.xlu0 %908
      %910 = vrot.lane.b32.xlu0 %v393, 4
      %v911 = vpop.permute.xlu0 %910
      %912 = vrot.lane.b32.xlu0 %v398, 4
      %v913 = vpop.permute.xlu0 %912
      %914 = vrot.lane.b32.xlu0 %v403, 4
      %v915 = vpop.permute.xlu0 %914
      %916 = vrot.lane.b32.xlu0 %v408, 4
      %v917 = vpop.permute.xlu0 %916
      %918 = vrot.lane.b32.xlu0 %v413, 4
      %v919 = vpop.permute.xlu0 %918
      %920 = vrot.lane.b32.xlu0 %v418, 4
      %v921 = vpop.permute.xlu0 %920
      %922 = vrot.lane.b32.xlu0 %v423, 4
      %v923 = vpop.permute.xlu0 %922
      %924 = vrot.lane.b32.xlu0 %v428, 4
      %v925 = vpop.permute.xlu0 %924
      %926 = vrot.lane.b32.xlu0 %v433, 4
      %v927 = vpop.permute.xlu0 %926
      %928 = vrot.lane.b32.xlu0 %v438, 4
      %v929 = vpop.permute.xlu0 %928
      %930 = vrot.lane.b32.xlu0 %v443, 4
      %v931 = vpop.permute.xlu0 %930
      %932 = vrot.lane.b32.xlu0 %v448, 4
      %v933 = vpop.permute.xlu0 %932
      %934 = vrot.lane.b32.xlu0 %v453, 4
      %v935 = vpop.permute.xlu0 %934
      %936 = vrot.lane.b32.xlu0 %v458, 4
      %v937 = vpop.permute.xlu0 %936
      %938 = vrot.lane.b32.xlu0 %v463, 4
      %v939 = vpop.permute.xlu0 %938
      %956 = vrot.lane.b32.xlu0 %v388, 5
      %v957 = vpop.permute.xlu0 %956
      %958 = vrot.lane.b32.xlu0 %v393, 5
      %v959 = vpop.permute.xlu0 %958
      %960 = vrot.lane.b32.xlu0 %v398, 5
      %v961 = vpop.permute.xlu0 %960
      %962 = vrot.lane.b32.xlu0 %v403, 5
      %v963 = vpop.permute.xlu0 %962
      %964 = vrot.lane.b32.xlu0 %v408, 5
      %v965 = vpop.permute.xlu0 %964
      %966 = vrot.lane.b32.xlu0 %v413, 5
      %v967 = vpop.permute.xlu0 %966
      %968 = vrot.lane.b32.xlu0 %v418, 5
      %v969 = vpop.permute.xlu0 %968
      %970 = vrot.lane.b32.xlu0 %v423, 5
      %v971 = vpop.permute.xlu0 %970
      %972 = vrot.lane.b32.xlu0 %v428, 5
      %v973 = vpop.permute.xlu0 %972
      %974 = vrot.lane.b32.xlu0 %v433, 5
      %v975 = vpop.permute.xlu0 %974
      %976 = vrot.lane.b32.xlu0 %v438, 5
      %v977 = vpop.permute.xlu0 %976
      %978 = vrot.lane.b32.xlu0 %v443, 5
      %v979 = vpop.permute.xlu0 %978
      %980 = vrot.lane.b32.xlu0 %v448, 5
      %v981 = vpop.permute.xlu0 %980
      %982 = vrot.lane.b32.xlu0 %v453, 5
      %v983 = vpop.permute.xlu0 %982
      %984 = vrot.lane.b32.xlu0 %v458, 5
      %v985 = vpop.permute.xlu0 %984
      %986 = vrot.lane.b32.xlu0 %v463, 5
      %v987 = vpop.permute.xlu0 %986
      %1004 = vrot.lane.b32.xlu0 %v388, 6
      %v1005 = vpop.permute.xlu0 %1004
      %1006 = vrot.lane.b32.xlu0 %v393, 6
      %v1007 = vpop.permute.xlu0 %1006
      %1008 = vrot.lane.b32.xlu0 %v398, 6
      %v1009 = vpop.permute.xlu0 %1008
      %1010 = vrot.lane.b32.xlu0 %v403, 6
      %v1011 = vpop.permute.xlu0 %1010
      %1012 = vrot.lane.b32.xlu0 %v408, 6
      %v1013 = vpop.permute.xlu0 %1012
      %1014 = vrot.lane.b32.xlu0 %v413, 6
      %v1015 = vpop.permute.xlu0 %1014
      %1016 = vrot.lane.b32.xlu0 %v418, 6
      %v1017 = vpop.permute.xlu0 %1016
      %1018 = vrot.lane.b32.xlu0 %v423, 6
      %v1019 = vpop.permute.xlu0 %1018
      %1020 = vrot.lane.b32.xlu0 %v428, 6
      %v1021 = vpop.permute.xlu0 %1020
      %1022 = vrot.lane.b32.xlu0 %v433, 6
      %v1023 = vpop.permute.xlu0 %1022
      %1024 = vrot.lane.b32.xlu0 %v438, 6
      %v1025 = vpop.permute.xlu0 %1024
      %1026 = vrot.lane.b32.xlu0 %v443, 6
      %v1027 = vpop.permute.xlu0 %1026
      %1028 = vrot.lane.b32.xlu0 %v448, 6
      %v1029 = vpop.permute.xlu0 %1028
      %1030 = vrot.lane.b32.xlu0 %v453, 6
      %v1031 = vpop.permute.xlu0 %1030
      %1032 = vrot.lane.b32.xlu0 %v458, 6
      %v1033 = vpop.permute.xlu0 %1032
      %1034 = vrot.lane.b32.xlu0 %v463, 6
      %v1035 = vpop.permute.xlu0 %1034
      %1052 = vrot.lane.b32.xlu0 %v388, 7
      %v1053 = vpop.permute.xlu0 %1052
      %1054 = vrot.lane.b32.xlu0 %v393, 7
      %v1055 = vpop.permute.xlu0 %1054
      %1056 = vrot.lane.b32.xlu0 %v398, 7
      %v1057 = vpop.permute.xlu0 %1056
      %1058 = vrot.lane.b32.xlu0 %v403, 7
      %v1059 = vpop.permute.xlu0 %1058
      %1060 = vrot.lane.b32.xlu0 %v408, 7
      %v1061 = vpop.permute.xlu0 %1060
      %1062 = vrot.lane.b32.xlu0 %v413, 7
      %v1063 = vpop.permute.xlu0 %1062
      %1064 = vrot.lane.b32.xlu0 %v418, 7
      %v1065 = vpop.permute.xlu0 %1064
      %1066 = vrot.lane.b32.xlu0 %v423, 7
      %v1067 = vpop.permute.xlu0 %1066
      %1068 = vrot.lane.b32.xlu0 %v428, 7
      %v1069 = vpop.permute.xlu0 %1068
      %1070 = vrot.lane.b32.xlu0 %v433, 7
      %v1071 = vpop.permute.xlu0 %1070
      %1072 = vrot.lane.b32.xlu0 %v438, 7
      %v1073 = vpop.permute.xlu0 %1072
      %1074 = vrot.lane.b32.xlu0 %v443, 7
      %v1075 = vpop.permute.xlu0 %1074
      %1076 = vrot.lane.b32.xlu0 %v448, 7
      %v1077 = vpop.permute.xlu0 %1076
      %1078 = vrot.lane.b32.xlu0 %v453, 7
      %v1079 = vpop.permute.xlu0 %1078
      %1080 = vrot.lane.b32.xlu0 %v458, 7
      %v1081 = vpop.permute.xlu0 %1080
      %1082 = vrot.lane.b32.xlu0 %v463, 7
      %v1083 = vpop.permute.xlu0 %1082
      %v1100 = vsel %vm272, %v388, 1.0
      %v1101 = vsel %vm272, %v393, 1.0
      %v1102 = vsel %vm272, %v398, 1.0
      %v1103 = vsel %vm272, %v403, 1.0
      %v1104 = vsel %vm272, %v408, 1.0
      %v1105 = vsel %vm272, %v413, 1.0
      %v1106 = vsel %vm272, %v418, 1.0
      %v1107 = vsel %vm272, %v423, 1.0
      %v1108 = vsel %vm272, %v428, 1.0
      %v1109 = vsel %vm272, %v433, 1.0
      %v1110 = vsel %vm272, %v438, 1.0
      %v1111 = vsel %vm272, %v443, 1.0
      %v1112 = vsel %vm272, %v448, 1.0
      %v1113 = vsel %vm272, %v453, 1.0
      %v1114 = vsel %vm272, %v458, 1.0
      %v1115 = vsel %vm272, %v463, 1.0
      %vm1116 = vcmask 72704
      %v1117 = vsel %vm1116, %v1100, %v765
      %v1118 = vsel %vm1116, %v1101, %v767
      %v1119 = vsel %vm1116, %v1102, %v769
      %v1120 = vsel %vm1116, %v1103, %v771
      %v1121 = vsel %vm1116, %v1104, %v773
      %v1122 = vsel %vm1116, %v1105, %v775
      %v1123 = vsel %vm1116, %v1106, %v777
      %v1124 = vsel %vm1116, %v1107, %v779
      %v1125 = vsel %vm1116, %v1108, %v781
      %v1126 = vsel %vm1116, %v1109, %v783
      %v1127 = vsel %vm1116, %v1110, %v785
      %v1128 = vsel %vm1116, %v1111, %v787
      %v1129 = vsel %vm1116, %v1112, %v789
      %v1130 = vsel %vm1116, %v1113, %v791
      %v1131 = vsel %vm1116, %v1114, %v793
      %v1132 = vsel %vm1116, %v1115, %v795
      %vm1133 = vcmask 138240
      %v1134 = vsel %vm1133, %v1117, 1.0
      %v1135 = vsel %vm1133, %v1118, 1.0
      %v1136 = vsel %vm1133, %v1119, 1.0
      %v1137 = vsel %vm1133, %v1120, 1.0
      %v1138 = vsel %vm1133, %v1121, 1.0
      %v1139 = vsel %vm1133, %v1122, 1.0
      %v1140 = vsel %vm1133, %v1123, 1.0
      %v1141 = vsel %vm1133, %v1124, 1.0
      %v1142 = vsel %vm1133, %v1125, 1.0
      %v1143 = vsel %vm1133, %v1126, 1.0
      %v1144 = vsel %vm1133, %v1127, 1.0
      %v1145 = vsel %vm1133, %v1128, 1.0
      %v1146 = vsel %vm1133, %v1129, 1.0
      %v1147 = vsel %vm1133, %v1130, 1.0
      %v1148 = vsel %vm1133, %v1131, 1.0
      %v1149 = vsel %vm1133, %v1132, 1.0
      %vm1150 = vcmask 146432
      %v1151 = vsel %vm1150, %v1134, %v813
      %v1152 = vsel %vm1150, %v1135, %v815
      %v1153 = vsel %vm1150, %v1136, %v817
      %v1154 = vsel %vm1150, %v1137, %v819
      %v1155 = vsel %vm1150, %v1138, %v821
      %v1156 = vsel %vm1150, %v1139, %v823
      %v1157 = vsel %vm1150, %v1140, %v825
      %v1158 = vsel %vm1150, %v1141, %v827
      %v1159 = vsel %vm1150, %v1142, %v829
      %v1160 = vsel %vm1150, %v1143, %v831
      %v1161 = vsel %vm1150, %v1144, %v833
      %v1162 = vsel %vm1150, %v1145, %v835
      %v1163 = vsel %vm1150, %v1146, %v837
      %v1164 = vsel %vm1150, %v1147, %v839
      %v1165 = vsel %vm1150, %v1148, %v841
      %v1166 = vsel %vm1150, %v1149, %v843
      %vm1167 = vcmask 211968
      %v1168 = vsel %vm1167, %v1151, 1.0
      %v1169 = vsel %vm1167, %v1152, 1.0
      %v1170 = vsel %vm1167, %v1153, 1.0
      %v1171 = vsel %vm1167, %v1154, 1.0
      %v1172 = vsel %vm1167, %v1155, 1.0
      %v1173 = vsel %vm1167, %v1156, 1.0
      %v1174 = vsel %vm1167, %v1157, 1.0
      %v1175 = vsel %vm1167, %v1158, 1.0
      %v1176 = vsel %vm1167, %v1159, 1.0
      %v1177 = vsel %vm1167, %v1160, 1.0
      %v1178 = vsel %vm1167, %v1161, 1.0
      %v1179 = vsel %vm1167, %v1162, 1.0
      %v1180 = vsel %vm1167, %v1163, 1.0
      %v1181 = vsel %vm1167, %v1164, 1.0
      %v1182 = vsel %vm1167, %v1165, 1.0
      %v1183 = vsel %vm1167, %v1166, 1.0
      %vm1184 = vcmask 220160
      %v1185 = vsel %vm1184, %v1168, %v861
      %v1186 = vsel %vm1184, %v1169, %v863
      %v1187 = vsel %vm1184, %v1170, %v865
      %v1188 = vsel %vm1184, %v1171, %v867
      %v1189 = vsel %vm1184, %v1172, %v869
      %v1190 = vsel %vm1184, %v1173, %v871
      %v1191 = vsel %vm1184, %v1174, %v873
      %v1192 = vsel %vm1184, %v1175, %v875
      %v1193 = vsel %vm1184, %v1176, %v877
      %v1194 = vsel %vm1184, %v1177, %v879
      %v1195 = vsel %vm1184, %v1178, %v881
      %v1196 = vsel %vm1184, %v1179, %v883
      %v1197 = vsel %vm1184, %v1180, %v885
      %v1198 = vsel %vm1184, %v1181, %v887
      %v1199 = vsel %vm1184, %v1182, %v889
      %v1200 = vsel %vm1184, %v1183, %v891
      %vm1201 = vcmask 285696
      %v1202 = vsel %vm1201, %v1185, 1.0
      %v1203 = vsel %vm1201, %v1186, 1.0
      %v1204 = vsel %vm1201, %v1187, 1.0
      %v1205 = vsel %vm1201, %v1188, 1.0
      %v1206 = vsel %vm1201, %v1189, 1.0
      %v1207 = vsel %vm1201, %v1190, 1.0
      %v1208 = vsel %vm1201, %v1191, 1.0
      %v1209 = vsel %vm1201, %v1192, 1.0
      %v1210 = vsel %vm1201, %v1193, 1.0
      %v1211 = vsel %vm1201, %v1194, 1.0
      %v1212 = vsel %vm1201, %v1195, 1.0
      %v1213 = vsel %vm1201, %v1196, 1.0
      %v1214 = vsel %vm1201, %v1197, 1.0
      %v1215 = vsel %vm1201, %v1198, 1.0
      %v1216 = vsel %vm1201, %v1199, 1.0
      %v1217 = vsel %vm1201, %v1200, 1.0
      %vm1218 = vcmask 293888
      %v1219 = vsel %vm1218, %v1202, %v909
      %v1220 = vsel %vm1218, %v1203, %v911
      %v1221 = vsel %vm1218, %v1204, %v913
      %v1222 = vsel %vm1218, %v1205, %v915
      %v1223 = vsel %vm1218, %v1206, %v917
      %v1224 = vsel %vm1218, %v1207, %v919
      %v1225 = vsel %vm1218, %v1208, %v921
      %v1226 = vsel %vm1218, %v1209, %v923
      %v1227 = vsel %vm1218, %v1210, %v925
      %v1228 = vsel %vm1218, %v1211, %v927
      %v1229 = vsel %vm1218, %v1212, %v929
      %v1230 = vsel %vm1218, %v1213, %v931
      %v1231 = vsel %vm1218, %v1214, %v933
      %v1232 = vsel %vm1218, %v1215, %v935
      %v1233 = vsel %vm1218, %v1216, %v937
      %v1234 = vsel %vm1218, %v1217, %v939
      %vm1235 = vcmask 359424
      %v1236 = vsel %vm1235, %v1219, 1.0
      %v1237 = vsel %vm1235, %v1220, 1.0
      %v1238 = vsel %vm1235, %v1221, 1.0
      %v1239 = vsel %vm1235, %v1222, 1.0
      %v1240 = vsel %vm1235, %v1223, 1.0
      %v1241 = vsel %vm1235, %v1224, 1.0
      %v1242 = vsel %vm1235, %v1225, 1.0
      %v1243 = vsel %vm1235, %v1226, 1.0
      %v1244 = vsel %vm1235, %v1227, 1.0
      %v1245 = vsel %vm1235, %v1228, 1.0
      %v1246 = vsel %vm1235, %v1229, 1.0
      %v1247 = vsel %vm1235, %v1230, 1.0
      %v1248 = vsel %vm1235, %v1231, 1.0
      %v1249 = vsel %vm1235, %v1232, 1.0
      %v1250 = vsel %vm1235, %v1233, 1.0
      %v1251 = vsel %vm1235, %v1234, 1.0
      %vm1252 = vcmask 367616
      %v1253 = vsel %vm1252, %v1236, %v957
      %v1254 = vsel %vm1252, %v1237, %v959
      %v1255 = vsel %vm1252, %v1238, %v961
      %v1256 = vsel %vm1252, %v1239, %v963
      %v1257 = vsel %vm1252, %v1240, %v965
      %v1258 = vsel %vm1252, %v1241, %v967
      %v1259 = vsel %vm1252, %v1242, %v969
      %v1260 = vsel %vm1252, %v1243, %v971
      %v1261 = vsel %vm1252, %v1244, %v973
      %v1262 = vsel %vm1252, %v1245, %v975
      %v1263 = vsel %vm1252, %v1246, %v977
      %v1264 = vsel %vm1252, %v1247, %v979
      %v1265 = vsel %vm1252, %v1248, %v981
      %v1266 = vsel %vm1252, %v1249, %v983
      %v1267 = vsel %vm1252, %v1250, %v985
      %v1268 = vsel %vm1252, %v1251, %v987
      %vm1269 = vcmask 433152
      %v1270 = vsel %vm1269, %v1253, 1.0
      %v1271 = vsel %vm1269, %v1254, 1.0
      %v1272 = vsel %vm1269, %v1255, 1.0
      %v1273 = vsel %vm1269, %v1256, 1.0
      %v1274 = vsel %vm1269, %v1257, 1.0
      %v1275 = vsel %vm1269, %v1258, 1.0
      %v1276 = vsel %vm1269, %v1259, 1.0
      %v1277 = vsel %vm1269, %v1260, 1.0
      %v1278 = vsel %vm1269, %v1261, 1.0
      %v1279 = vsel %vm1269, %v1262, 1.0
      %v1280 = vsel %vm1269, %v1263, 1.0
      %v1281 = vsel %vm1269, %v1264, 1.0
      %v1282 = vsel %vm1269, %v1265, 1.0
      %v1283 = vsel %vm1269, %v1266, 1.0
      %v1284 = vsel %vm1269, %v1267, 1.0
      %v1285 = vsel %vm1269, %v1268, 1.0
      %vm1286 = vcmask 441344
      %v1287 = vsel %vm1286, %v1270, %v1005
      %v1288 = vsel %vm1286, %v1271, %v1007
      %v1289 = vsel %vm1286, %v1272, %v1009
      %v1290 = vsel %vm1286, %v1273, %v1011
      %v1291 = vsel %vm1286, %v1274, %v1013
      %v1292 = vsel %vm1286, %v1275, %v1015
      %v1293 = vsel %vm1286, %v1276, %v1017
      %v1294 = vsel %vm1286, %v1277, %v1019
      %v1295 = vsel %vm1286, %v1278, %v1021
      %v1296 = vsel %vm1286, %v1279, %v1023
      %v1297 = vsel %vm1286, %v1280, %v1025
      %v1298 = vsel %vm1286, %v1281, %v1027
      %v1299 = vsel %vm1286, %v1282, %v1029
      %v1300 = vsel %vm1286, %v1283, %v1031
      %v1301 = vsel %vm1286, %v1284, %v1033
      %v1302 = vsel %vm1286, %v1285, %v1035
      %vm1303 = vcmask 506880
      %v1304 = vsel %vm1303, %v1287, 1.0
      %v1305 = vsel %vm1303, %v1288, 1.0
      %v1306 = vsel %vm1303, %v1289, 1.0
      %v1307 = vsel %vm1303, %v1290, 1.0
      %v1308 = vsel %vm1303, %v1291, 1.0
      %v1309 = vsel %vm1303, %v1292, 1.0
      %v1310 = vsel %vm1303, %v1293, 1.0
      %v1311 = vsel %vm1303, %v1294, 1.0
      %v1312 = vsel %vm1303, %v1295, 1.0
      %v1313 = vsel %vm1303, %v1296, 1.0
      %v1314 = vsel %vm1303, %v1297, 1.0
      %v1315 = vsel %vm1303, %v1298, 1.0
      %v1316 = vsel %vm1303, %v1299, 1.0
      %v1317 = vsel %vm1303, %v1300, 1.0
      %v1318 = vsel %vm1303, %v1301, 1.0
      %v1319 = vsel %vm1303, %v1302, 1.0
      %vm1320 = vcmask 515072
      %v1321 = vsel %vm1320, %v1304, %v1053
      %v1322 = vsel %vm1320, %v1305, %v1055
      %v1323 = vsel %vm1320, %v1306, %v1057
      %v1324 = vsel %vm1320, %v1307, %v1059
      %v1325 = vsel %vm1320, %v1308, %v1061
      %v1326 = vsel %vm1320, %v1309, %v1063
      %v1327 = vsel %vm1320, %v1310, %v1065
      %v1328 = vsel %vm1320, %v1311, %v1067
      %v1329 = vsel %vm1320, %v1312, %v1069
      %v1330 = vsel %vm1320, %v1313, %v1071
      %v1331 = vsel %vm1320, %v1314, %v1073
      %v1332 = vsel %vm1320, %v1315, %v1075
      %v1333 = vsel %vm1320, %v1316, %v1077
      %v1334 = vsel %vm1320, %v1317, %v1079
      %v1335 = vsel %vm1320, %v1318, %v1081
      %v1336 = vsel %vm1320, %v1319, %v1083
      %vm1337 = vcmask 580608
      %v1338 = vsel %vm1337, %v1321, 1.0
      %v1339 = vsel %vm1337, %v1322, 1.0
      %v1340 = vsel %vm1337, %v1323, 1.0
      %v1341 = vsel %vm1337, %v1324, 1.0
      %v1342 = vsel %vm1337, %v1325, 1.0
      %v1343 = vsel %vm1337, %v1326, 1.0
      %v1344 = vsel %vm1337, %v1327, 1.0
      %v1345 = vsel %vm1337, %v1328, 1.0
      %v1346 = vsel %vm1337, %v1329, 1.0
      %v1347 = vsel %vm1337, %v1330, 1.0
      %v1348 = vsel %vm1337, %v1331, 1.0
      %v1349 = vsel %vm1337, %v1332, 1.0
      %v1350 = vsel %vm1337, %v1333, 1.0
      %v1351 = vsel %vm1337, %v1334, 1.0
      %v1352 = vsel %vm1337, %v1335, 1.0
      %v1353 = vsel %vm1337, %v1336, 1.0
      %vm1354 = vcmask 588800
      %1355 = vst.msk [vmem:[%s241] sm:$0xff] %vm1354, %v1338
      %1356 = vst.msk [vmem:[%s241 + $0x8] sm:$0xff] %vm1354, %v1339
      %1357 = vst.msk [vmem:[%s241 + $0x10] sm:$0xff] %vm1354, %v1340
      %1358 = vst.msk [vmem:[%s241 + $0x18] sm:$0xff] %vm1354, %v1341
      %1359 = vst.msk [vmem:[%s241 + $0x20] sm:$0xff] %vm1354, %v1342
      %1360 = vst.msk [vmem:[%s241 + $0x28] sm:$0xff] %vm1354, %v1343
      %1361 = vst.msk [vmem:[%s241 + $0x30] sm:$0xff] %vm1354, %v1344
      %1362 = vst.msk [vmem:[%s241 + $0x38] sm:$0xff] %vm1354, %v1345
      %1363 = vst.msk [vmem:[%s241 + $0x40] sm:$0xff] %vm1354, %v1346
      %1364 = vst.msk [vmem:[%s241 + $0x48] sm:$0xff] %vm1354, %v1347
      %1365 = vst.msk [vmem:[%s241 + $0x50] sm:$0xff] %vm1354, %v1348
      %1366 = vst.msk [vmem:[%s241 + $0x58] sm:$0xff] %vm1354, %v1349
      %1367 = vst.msk [vmem:[%s241 + $0x60] sm:$0xff] %vm1354, %v1350
      %1368 = vst.msk [vmem:[%s241 + $0x68] sm:$0xff] %vm1354, %v1351
      %1369 = vst.msk [vmem:[%s241 + $0x70] sm:$0xff] %vm1354, %v1352
      %1370 = vst.msk [vmem:[%s241 + $0x78] sm:$0xff] %vm1354, %v1353
      %s1371 = smul.u32 16, %s17
      %p1372 = scmp.lt.s32.totalorder %s1371, 31
      %s1373 = scalar_select %p1372, %s1371, 31
      %s1374 = smul.addr %s1373, 8
      %s1375 = scalar_lea.vmem %s3, %s1374
      %s1376 = smul.u32 16, %s17
      %p1377 = scmp.lt.s32.totalorder %s1376, 31
      %s1378 = scalar_select %p1377, %s1376, 31
      %s1379 = smul.addr %s1378, 8
      %s1380 = scalar_lea.vmem %s4, %s1379
      %s1381 = smul.u32 16, %s17
      %p1382 = scmp.lt.s32.totalorder %s1381, 31
      %s1383 = scalar_select %p1382, %s1381, 31
      %s1384 = smul.addr %s1383, 8
      %s1385 = scalar_lea.vmem %s5, %s1384
      // Predicated region
      $region33: #{tpu_custom_call.1} parent=31 // pred_check
        %p1386 = pneg %p103
      $region34: #{tpu_custom_call.1} parent=31 // pred_check_branch
        %1388 = sbr.rel (%p1386) target = $region36
      $region35: #{tpu_custom_call.1} parent=31 // pred_region
        %s1389 = smul.u32 16, %s17
      $region36: #{tpu_custom_call.1} parent=31 // pred_fallthru
        _
      // Predicated region
      $region37: #{tpu_custom_call.1} parent=31 // pred_check
        %p1390 = pneg %p129
      $region38: #{tpu_custom_call.1} parent=31 // pred_check_branch
        %1392 = sbr.rel (%p1390) target = $region40
      $region39: #{tpu_custom_call.1} parent=31 // pred_region
        %s1393 = smul.u32 16, %s17
      $region40: #{tpu_custom_call.1} parent=31 // pred_fallthru
        _
      // Predicated region
      $region41: #{tpu_custom_call.1} parent=31 // pred_check
        %p1394 = pneg %p155
      $region42: #{tpu_custom_call.1} parent=31 // pred_check_branch
        %1396 = sbr.rel (%p1394) target = $region44
      $region43: #{tpu_custom_call.1} parent=31 // pred_region
        %s1397 = smul.u32 16, %s17
      $region44: #{tpu_custom_call.1} parent=31 // pred_fallthru
        _
    $region32: #{tpu_custom_call.1} parent=5 // pred_fallthru
      _
    %p1398 = scmp.le.s32.totalorder 2, %s12
    // Predicated region
    $region45: #{tpu_custom_call.1} parent=5 // pred_check
      %p1399 = pneg %p1398
    $region46: #{tpu_custom_call.1} parent=5 // pred_check_branch
      %1401 = sbr.rel (%p1399) target = $region48
    $region47: #{tpu_custom_call.1} parent=5 // pred_region
      %s1402 = ssub.s32 %s12, 2
      // Predicated region
      $region49: #{tpu_custom_call.1} parent=47 // pred_check
        %p1403 = pneg %p109
      $region50: #{tpu_custom_call.1} parent=47 // pred_check_branch
        %1405 = sbr.rel (%p1403) target = $region52
      $region51: #{tpu_custom_call.1} parent=47 // pred_region
        %s1406 = smul.u32 16, %s18
        %p1407 = scmp.lt.s32.totalorder %s1406, 31
        %s1408 = scalar_select %p1407, %s1406, 31
        %s1409 = smul.addr %s1408, 8
        %s1410 = scalar_lea.vmem %s3, %s1409
      $region52: #{tpu_custom_call.1} parent=47 // pred_fallthru
        _
      // Predicated region
      $region53: #{tpu_custom_call.1} parent=47 // pred_check
        %p1411 = pneg %p135
      $region54: #{tpu_custom_call.1} parent=47 // pred_check_branch
        %1413 = sbr.rel (%p1411) target = $region56
      $region55: #{tpu_custom_call.1} parent=47 // pred_region
        %s1414 = smul.u32 16, %s18
        %p1415 = scmp.lt.s32.totalorder %s1414, 31
        %s1416 = scalar_select %p1415, %s1414, 31
        %s1417 = smul.addr %s1416, 8
        %s1418 = scalar_lea.vmem %s4, %s1417
      $region56: #{tpu_custom_call.1} parent=47 // pred_fallthru
        _
      // Predicated region
      $region57: #{tpu_custom_call.1} parent=47 // pred_check
        %p1419 = pneg %p161
      $region58: #{tpu_custom_call.1} parent=47 // pred_check_branch
        %1421 = sbr.rel (%p1419) target = $region60
      $region59: #{tpu_custom_call.1} parent=47 // pred_region
        %s1422 = smul.u32 16, %s18
        %p1423 = scmp.lt.s32.totalorder %s1422, 31
        %s1424 = scalar_select %p1423, %s1422, 31
        %s1425 = smul.addr %s1424, 8
        %s1426 = scalar_lea.vmem %s5, %s1425
      $region60: #{tpu_custom_call.1} parent=47 // pred_fallthru
        _
    $region48: #{tpu_custom_call.1} parent=5 // pred_fallthru
      _
  $region6: #{tpu_custom_call.1} parent=0 // loop_footer
    %s16 = sadd.s32 1, %s12
  $region7: #{tpu_custom_call.1} parent=0 // loop_footer_branch
    %11 = sbr.rel target = $region3
  $region8: #{tpu_custom_call.1} parent=0 // loop_exit
    _

</llo_original>
